<compile_context>
chip_gen: v5e
topology: v5e:2x2
jax: 0.10.0
libtpu: 0.0.40
codegen_flags: <defaults>
</compile_context>

<pallas_src>
import functools

import numpy as np

import jax
import jax.numpy as jnp
from jax import lax
from jax.experimental import pallas as pl
from jax.experimental.pallas import tpu as pltpu

_REDUCE_CHUNK = 8  # channels per reduce/rescale chunk (one f32 sublane group)


# ----------------------------------------------------------------------------
# Helpers (host side)
# ----------------------------------------------------------------------------
def _round_up(x, m):
    return (x + m - 1) // m * m


def _build_masks(h, w, ksize, hwp):
    """(2*K, HWp) f32 border masks.

    Row dx in [0,K)      : 1.0 where (col + dx - pad) is a valid column.
    Row K+dy in [K,2K)   : 1.0 where (row + dy - pad) is a valid row.
    Lanes >= H*W (the 128-lane padding region) are always 0.
    """
    pad = ksize // 2
    hw = h * w
    lane = np.arange(hwp)
    row = lane // w
    col = lane % w
    valid = lane < hw
    rows = []
    for dx in range(ksize):
        ox = dx - pad
        rows.append((col + ox >= 0) & (col + ox < w) & valid)
    for dy in range(ksize):
        oy = dy - pad
        rows.append((row + oy >= 0) & (row + oy < h) & valid)
    return jnp.asarray(np.stack(rows).astype(np.float32))


def _vmem_budget():
    """(per-grid-step block budget, vmem_limit_bytes), chosen per TPU generation."""
    cap = 64 * 1024 * 1024  # conservative default (v7x per-core VMEM)
    try:
        info = pltpu.get_tpu_info()
        cap_attr = getattr(info, "vmem_capacity_bytes", None)
        if cap_attr:
            cap = int(cap_attr)
    except Exception:
        pass
    if cap >= 128 * 1024 * 1024:                    # v5e / v6e
        return 20 * 1024 * 1024, 64 * 1024 * 1024
    return 12 * 1024 * 1024, 48 * 1024 * 1024       # v7x (64 MiB per TC)


def _block_bytes(nb, c, hw, hwp, itemsize, ksize):
    """Rough per-grid-step VMEM footprint: double-buffered in+out blocks plus
    the f32 working maps (reduce chunk, shifted taps, attention, scratch)."""
    io = nb * c * hw * itemsize * 2 * 2          # in + out, double-buffered
    work = nb * hwp * 4 * 32                     # ~live f32 maps + slack
    masks = 2 * ksize * hwp * 4 * 2
    return io + work + masks


def _pick_batch_tile(n, c, hw, hwp, itemsize, ksize, budget):
    fitting = [d for d in range(1, n + 1)
               if n % d == 0 and _block_bytes(d, c, hw, hwp, itemsize, ksize) <= budget]
    if not fitting:
        return None                               # even one batch row does not fit
    multi = [d for d in fitting if n // d >= 2]   # keep >=2 grid steps (v7x megacore)
    return max(multi) if multi else max(fitting)


def _pick_channel_tile(c, hw, hwp, itemsize, ksize, budget):
    # Channel tiles must be a multiple of 8 (sublane rule) or the full C.
    cands = [d for d in range(1, c + 1) if c % d == 0 and (d % 8 == 0 or d == c)]
    fitting = [d for d in cands
               if _block_bytes(1, d, hw, hwp, itemsize, ksize) <= budget]
    return max(fitting) if fitting else min(cands)


# ----------------------------------------------------------------------------
# In-kernel conv helper (shared by both kernels)
# ----------------------------------------------------------------------------
def _conv_sigmoid_att(avg, mx, w_ref, b_ref, mask_ref, *, width, ksize):
    """sigmoid(bias + conv7x7([avg; mx])) on flattened, zero-padded spatial maps.

    avg, mx : (Bt, HWp) f32; lanes >= H*W (if any) must hold finite values (0).
    w_ref   : SMEM (2*K*K,) f32 weights, flattened (cin, ky, kx).
    b_ref   : SMEM (1,) f32 bias.
    mask_ref: VMEM (2*K, HWp) f32 border masks (see _build_masks).
    Returns att (Bt, HWp) f32; only lanes < H*W are meaningful.
    """
    pad = ksize // 2
    bt, hwp = avg.shape

    # Hoist every conv weight and the bias into scalars up front.
    wgt = [[[w_ref[(ci * ksize + dy) * ksize + dx] for dx in range(ksize)]
            for dy in range(ksize)] for ci in range(2)]
    bias = b_ref[0]

    # Hoist the border masks (the centre taps are always valid -> skip the mul).
    cmask = [None if dx == pad else mask_ref[dx:dx + 1, :] for dx in range(ksize)]
    rmask = [None if dy == pad else mask_ref[ksize + dy:ksize + dy + 1, :]
             for dy in range(ksize)]

    # Per-output-row weighted sums S_dy: 6 col-masked horizontal rolls per
    # channel, 98 scalar*map FMAs on the VPU.  Only one channel's 7 shifted
    # maps are live at a time.
    s_dy = [None] * ksize
    for ci, src in enumerate((avg, mx)):
        hmaps = []
        for dx in range(ksize):
            ox = dx - pad
            t = src if ox == 0 else pltpu.roll(src, (-ox) % hwp, axis=1)
            if cmask[dx] is not None:
                t = t * cmask[dx]
            hmaps.append(t)
        for dy in range(ksize):
            part = wgt[ci][dy][0] * hmaps[0]
            for dx in range(1, ksize):
                part = part + wgt[ci][dy][dx] * hmaps[dx]
            s_dy[dy] = part if s_dy[dy] is None else s_dy[dy] + part

    # One vertical roll + row mask per output row.
    # TODO(synk): optionally accumulate the tap arithmetic in bf16 on v6e/v7x
    # (bf16 VALU) if callers tolerate it; kept f32 to match PyTorch numerics.
    acc = jnp.full((bt, hwp), bias, dtype=jnp.float32)
    for dy in range(ksize):
        oy = dy - pad
        t = s_dy[dy] if oy == 0 else pltpu.roll(s_dy[dy], (-oy * width) % hwp, axis=1)
        if rmask[dy] is not None:
            t = t * rmask[dy]
        acc = acc + t
    return jax.nn.sigmoid(acc)


# ----------------------------------------------------------------------------
# Main single-pass kernel (batch-tiled)
# ----------------------------------------------------------------------------
def _spatial_attention_kernel(w_ref, b_ref, mask_ref, x_ref, o_ref,
                              avg_ref, max_ref, *, width, ksize):
    # x_ref / o_ref : VMEM (Bt, C, HW) in the caller's dtype.
    # avg_ref/max_ref: VMEM (Bt, HWp) f32 scratch (128-lane-aligned staging).
    bt, c, hw = x_ref.shape
    hwp = avg_ref.shape[1]

    # ---- fused mean/max channel reduction: single sweep over the block ----
    chunk = min(c, _REDUCE_CHUNK)
    v = x_ref[:, 0:chunk, :].astype(jnp.float32)
    s = jnp.sum(v, axis=1)
    m = jnp.max(v, axis=1)
    for c0 in range(chunk, c, chunk):
        c1 = min(c0 + chunk, c)
        v = x_ref[:, c0:c1, :].astype(jnp.float32)
        s = s + jnp.sum(v, axis=1)
        m = jnp.maximum(m, jnp.max(v, axis=1))
    avg = s * (1.0 / c)

    # ---- stage into lane-aligned zero-padded maps when HW % 128 != 0 ----
    if hwp > hw:
        avg_ref[...] = jnp.zeros_like(avg_ref)
        max_ref[...] = jnp.zeros_like(max_ref)
        avg_ref[:, :hw] = avg
        max_ref[:, :hw] = m
        avg_p, max_p = avg_ref[...], max_ref[...]
    else:
        avg_p, max_p = avg, m

    att = _conv_sigmoid_att(avg_p, max_p, w_ref, b_ref, mask_ref,
                            width=width, ksize=ksize)
    attb = att[:, :hw][:, None, :]                       # (Bt, 1, HW)

    # ---- rescale: re-read x chunk-by-chunk (bounded live values), native out ----
    for c0 in range(0, c, chunk):
        c1 = min(c0 + chunk, c)
        xv = x_ref[:, c0:c1, :].astype(jnp.float32)
        o_ref[:, c0:c1, :] = (xv * attb).astype(o_ref.dtype)


# ----------------------------------------------------------------------------
# Two-phase channel-split fallback kernel (blocks too big for one grid step)
# ----------------------------------------------------------------------------
def _spatial_attention_split_kernel(w_ref, b_ref, mask_ref, x_ref, o_ref,
                                    sum_ref, max_ref, att_ref,
                                    *, width, ksize, c_total):
    # grid = (N, 2, C // ct); phase 0 accumulates sum/max and builds the
    # attention map, phase 1 rescales every channel block with it.
    phase = pl.program_id(1)
    cb = pl.program_id(2)
    ncb = pl.num_programs(2)
    bt, _ct, hw = x_ref.shape

    @pl.when(jnp.logical_and(phase == 0, cb == 0))
    def _init():
        sum_ref[...] = jnp.zeros_like(sum_ref)
        max_ref[...] = jnp.zeros_like(max_ref)        # keep pad lanes finite (0)
        max_ref[:, :hw] = jnp.full((bt, hw), -jnp.inf, dtype=jnp.float32)

    @pl.when(phase == 0)
    def _reduce():
        v = x_ref[...].astype(jnp.float32)            # (bt, ct, hw)
        sum_ref[:, :hw] = sum_ref[:, :hw] + jnp.sum(v, axis=1)
        max_ref[:, :hw] = jnp.maximum(max_ref[:, :hw], jnp.max(v, axis=1))
        o_ref[...] = x_ref[...]                       # placeholder; rewritten in phase 1

    @pl.when(jnp.logical_and(phase == 0, cb == ncb - 1))
    def _attention():
        avg = sum_ref[...] * (1.0 / c_total)
        att_ref[...] = _conv_sigmoid_att(avg, max_ref[...], w_ref, b_ref, mask_ref,
                                         width=width, ksize=ksize)

    @pl.when(phase == 1)
    def _rescale():
        attb = att_ref[:, :hw][:, None, :]
        o_ref[...] = (x_ref[...].astype(jnp.float32) * attb).astype(o_ref.dtype)


# ----------------------------------------------------------------------------
# Wrapper
# ----------------------------------------------------------------------------
def spatial_attention(x, weight, bias, *, block_budget_bytes=None):
    """x: (N, C, H, W); weight: (1, 2, K, K); bias: (1,).
    Returns x * sigmoid(conv7x7([mean_c(x); max_c(x)])) in x.dtype."""
    if x.ndim != 4:
        # Matches the PyTorch module: non-4D inputs pass through untouched.
        return x
    N, C, H, W = map(int, x.shape)
    K = int(weight.shape[-1])
    assert K % 2 == 1, "Kernel size must be odd"
    HW = H * W
    HWP = _round_up(HW, 128)

    x_flat = x.reshape(N, C, HW)                            # native dtype, free reshape
    w_flat = weight.reshape(-1).astype(jnp.float32)         # (2*K*K,), (cin, ky, kx) order
    b_flat = bias.reshape(-1).astype(jnp.float32)           # (1,)
    masks = _build_masks(H, W, K, HWP)                      # (2*K, HWP) f32

    budget, vmem_limit = _vmem_budget()
    if block_budget_bytes is not None:
        budget = block_budget_bytes
    isz = jnp.dtype(x.dtype).itemsize

    bt = _pick_batch_tile(N, C, HW, HWP, isz, K, budget)

    if bt is not None:
        # ---- main single-pass kernel, batch-tiled ----
        kernel = functools.partial(_spatial_attention_kernel, width=W, ksize=K)
        out_flat = pl.pallas_call(
            kernel,
            out_shape=jax.ShapeDtypeStruct((N, C, HW), x.dtype),
            grid=(N // bt,),
            in_specs=[
                pl.BlockSpec(memory_space=pltpu.MemorySpace.SMEM),   # conv weights
                pl.BlockSpec(memory_space=pltpu.MemorySpace.SMEM),   # conv bias
                pl.BlockSpec((2 * K, HWP), lambda b: (0, 0)),        # border masks (resident)
                pl.BlockSpec((bt, C, HW), lambda b: (b, 0, 0)),      # x, lane-dense
            ],
            out_specs=pl.BlockSpec((bt, C, HW), lambda b: (b, 0, 0)),
            scratch_shapes=[pltpu.VMEM((bt, HWP), jnp.float32),
                            pltpu.VMEM((bt, HWP), jnp.float32)],
            compiler_params=pltpu.CompilerParams(
                dimension_semantics=("parallel",),
                vmem_limit_bytes=vmem_limit),
        )(w_flat, b_flat, masks, x_flat)
    else:
        # ---- fallback: two-phase channel split (single batch row per step) ----
        ct = _pick_channel_tile(C, HW, HWP, isz, K, budget)
        kernel = functools.partial(_spatial_attention_split_kernel,
                                   width=W, ksize=K, c_total=C)
        out_flat = pl.pallas_call(
            kernel,
            out_shape=jax.ShapeDtypeStruct((N, C, HW), x.dtype),
            grid=(N, 2, C // ct),
            in_specs=[
                pl.BlockSpec(memory_space=pltpu.MemorySpace.SMEM),
                pl.BlockSpec(memory_space=pltpu.MemorySpace.SMEM),
                pl.BlockSpec((2 * K, HWP), lambda b, p, ci: (0, 0)),
                pl.BlockSpec((1, ct, HW), lambda b, p, ci: (b, ci, 0)),
            ],
            out_specs=pl.BlockSpec((1, ct, HW), lambda b, p, ci: (b, ci, 0)),
            scratch_shapes=[pltpu.VMEM((1, HWP), jnp.float32),   # running sum
                            pltpu.VMEM((1, HWP), jnp.float32),   # running max
                            pltpu.VMEM((1, HWP), jnp.float32)],  # attention map
            compiler_params=pltpu.CompilerParams(
                dimension_semantics=("parallel", "arbitrary", "arbitrary"),
                vmem_limit_bytes=vmem_limit),
        )(w_flat, b_flat, masks, x_flat)

    return out_flat.reshape(N, C, H, W)


# ----------------------------------------------------------------------------
# Pure-JAX reference mirroring the PyTorch forward
# ----------------------------------------------------------------------------
def _reference(x, weight, bias):
    pad = weight.shape[-1] // 2
    avg = jnp.mean(x, axis=1, keepdims=True)
    mx = jnp.max(x, axis=1, keepdims=True)
    xcat = jnp.concatenate([avg, mx], axis=1)                # (N, 2, H, W)
    out = lax.conv_general_dilated(
        xcat, weight, window_strides=(1, 1),
        padding=[(pad, pad), (pad, pad)],
        dimension_numbers=("NCHW", "OIHW", "NCHW"))
    out = out + bias.reshape(1, 1, 1, 1)
    return x * jax.nn.sigmoid(out)


if __name__ == "__main__":
    key = jax.random.PRNGKey(0)
    kx1, kx2, kx3, kw, kb = jax.random.split(key, 5)

    K = 7
    fan_in = 2 * K * K
    bound = 1.0 / (fan_in ** 0.5)
    weight = jax.random.uniform(kw, (1, 2, K, K), minval=-bound, maxval=bound,
                                dtype=jnp.float32)
    bias = jax.random.uniform(kb, (1,), minval=-bound, maxval=bound,
                              dtype=jnp.float32)

    # Case 1: f32, HW a multiple of 128, batched (main single-pass kernel).
    x1 = jax.random.normal(kx1, (2, 4, 16, 16), dtype=jnp.float32)
    out1 = jax.block_until_ready(spatial_attention(x1, weight, bias))
    ref1 = _reference(x1, weight, bias)
    assert out1.dtype == x1.dtype
    assert jnp.allclose(out1, ref1, atol=1e-5, rtol=1e-5), "case1 mismatch vs reference"

    # Case 2: bf16 input (native-dtype I/O) with ragged HW (exercises lane padding).
    x2 = jax.random.normal(kx2, (2, 6, 10, 12), dtype=jnp.bfloat16)
    out2 = jax.block_until_ready(spatial_attention(x2, weight, bias))
    ref2 = _reference(x2.astype(jnp.float32), weight, bias)
    assert out2.dtype == x2.dtype
    assert jnp.allclose(out2.astype(jnp.float32), ref2, atol=2e-2, rtol=2e-2), \
        "case2 mismatch vs reference"

    # Case 3: force the two-phase channel-split fallback (v7x safety path).
    x3 = jax.random.normal(kx3, (1, 16, 8, 16), dtype=jnp.float32)
    out3 = jax.block_until_ready(spatial_attention(x3, weight, bias, block_budget_bytes=1))
    ref3 = _reference(x3, weight, bias)
    assert jnp.allclose(out3, ref3, atol=1e-5, rtol=1e-5), "case3 mismatch vs reference"

    print("KERNEL_OK")
</pallas_src>

<mosaic_0001>
module attributes {stable_mosaic.version = 11 : i64} {
  func.func @_spatial_attention_kernel(%arg0: i32, %arg1: memref<98xf32, #tpu.memory_space<smem>>, %arg2: memref<1xf32, #tpu.memory_space<smem>>, %arg3: memref<14x256xf32, #tpu.memory_space<vmem>>, %arg4: memref<1x4x256xf32, #tpu.memory_space<vmem>>, %arg5: memref<1x4x256xf32, #tpu.memory_space<vmem>>, %arg6: memref<1x256xf32, #tpu.memory_space<vmem>>, %arg7: memref<1x256xf32, #tpu.memory_space<vmem>>) attributes {dimension_semantics = [#tpu.dimension_semantics<parallel>], iteration_bounds = array<i64: 2>, scalar_prefetch = 0 : i64, scratch_operands = 2 : i64, tpu.core_type = #tpu.core_type<tc>, window_params = [{transform_indices = @transform_0, window_bounds = array<i64: 98>}, {transform_indices = @transform_1, window_bounds = array<i64: 1>}, {pipeline_mode = #tpu.pipeline_mode<synchronous>, transform_indices = @transform_2, window_bounds = array<i64: 14, 256>}, {transform_indices = @transform_3, window_bounds = array<i64: 1, 4, 256>}, {transform_indices = @transform_4, window_bounds = array<i64: 1, 4, 256>}]} {
    %c0 = arith.constant 0 : index
    %c0_0 = arith.constant 0 : index
    %c0_1 = arith.constant 0 : index
    %0 = vector.load %arg4[%c0, %c0_0, %c0_1] : memref<1x4x256xf32, #tpu.memory_space<vmem>>, vector<1x4x256xf32>
    %cst = arith.constant dense<0.000000e+00> : vector<1x256xf32>
    %1 = vector.multi_reduction <add>, %0, %cst [1] : vector<1x4x256xf32> to vector<1x256xf32>
    %cst_2 = arith.constant dense<0xFF800000> : vector<1x256xf32>
    %2 = vector.multi_reduction <maximumf>, %0, %cst_2 [1] : vector<1x4x256xf32> to vector<1x256xf32>
    %cst_3 = arith.constant 2.500000e-01 : f32
    %3 = vector.broadcast %cst_3 : f32 to vector<1x256xf32>
    %4 = arith.mulf %1, %3 : vector<1x256xf32>
    %c0_4 = arith.constant 0 : index
    %5 = memref.load %arg1[%c0_4] : memref<98xf32, #tpu.memory_space<smem>>
    %c1 = arith.constant 1 : index
    %6 = memref.load %arg1[%c1] : memref<98xf32, #tpu.memory_space<smem>>
    %c2 = arith.constant 2 : index
    %7 = memref.load %arg1[%c2] : memref<98xf32, #tpu.memory_space<smem>>
    %c3 = arith.constant 3 : index
    %8 = memref.load %arg1[%c3] : memref<98xf32, #tpu.memory_space<smem>>
    %c4 = arith.constant 4 : index
    %9 = memref.load %arg1[%c4] : memref<98xf32, #tpu.memory_space<smem>>
    %c5 = arith.constant 5 : index
    %10 = memref.load %arg1[%c5] : memref<98xf32, #tpu.memory_space<smem>>
    %c6 = arith.constant 6 : index
    %11 = memref.load %arg1[%c6] : memref<98xf32, #tpu.memory_space<smem>>
    %c7 = arith.constant 7 : index
    %12 = memref.load %arg1[%c7] : memref<98xf32, #tpu.memory_space<smem>>
    %c8 = arith.constant 8 : index
    %13 = memref.load %arg1[%c8] : memref<98xf32, #tpu.memory_space<smem>>
    %c9 = arith.constant 9 : index
    %14 = memref.load %arg1[%c9] : memref<98xf32, #tpu.memory_space<smem>>
    %c10 = arith.constant 10 : index
    %15 = memref.load %arg1[%c10] : memref<98xf32, #tpu.memory_space<smem>>
    %c11 = arith.constant 11 : index
    %16 = memref.load %arg1[%c11] : memref<98xf32, #tpu.memory_space<smem>>
    %c12 = arith.constant 12 : index
    %17 = memref.load %arg1[%c12] : memref<98xf32, #tpu.memory_space<smem>>
    %c13 = arith.constant 13 : index
    %18 = memref.load %arg1[%c13] : memref<98xf32, #tpu.memory_space<smem>>
    %c14 = arith.constant 14 : index
    %19 = memref.load %arg1[%c14] : memref<98xf32, #tpu.memory_space<smem>>
    %c15 = arith.constant 15 : index
    %20 = memref.load %arg1[%c15] : memref<98xf32, #tpu.memory_space<smem>>
    %c16 = arith.constant 16 : index
    %21 = memref.load %arg1[%c16] : memref<98xf32, #tpu.memory_space<smem>>
    %c17 = arith.constant 17 : index
    %22 = memref.load %arg1[%c17] : memref<98xf32, #tpu.memory_space<smem>>
    %c18 = arith.constant 18 : index
    %23 = memref.load %arg1[%c18] : memref<98xf32, #tpu.memory_space<smem>>
    %c19 = arith.constant 19 : index
    %24 = memref.load %arg1[%c19] : memref<98xf32, #tpu.memory_space<smem>>
    %c20 = arith.constant 20 : index
    %25 = memref.load %arg1[%c20] : memref<98xf32, #tpu.memory_space<smem>>
    %c21 = arith.constant 21 : index
    %26 = memref.load %arg1[%c21] : memref<98xf32, #tpu.memory_space<smem>>
    %c22 = arith.constant 22 : index
    %27 = memref.load %arg1[%c22] : memref<98xf32, #tpu.memory_space<smem>>
    %c23 = arith.constant 23 : index
    %28 = memref.load %arg1[%c23] : memref<98xf32, #tpu.memory_space<smem>>
    %c24 = arith.constant 24 : index
    %29 = memref.load %arg1[%c24] : memref<98xf32, #tpu.memory_space<smem>>
    %c25 = arith.constant 25 : index
    %30 = memref.load %arg1[%c25] : memref<98xf32, #tpu.memory_space<smem>>
    %c26 = arith.constant 26 : index
    %31 = memref.load %arg1[%c26] : memref<98xf32, #tpu.memory_space<smem>>
    %c27 = arith.constant 27 : index
    %32 = memref.load %arg1[%c27] : memref<98xf32, #tpu.memory_space<smem>>
    %c28 = arith.constant 28 : index
    %33 = memref.load %arg1[%c28] : memref<98xf32, #tpu.memory_space<smem>>
    %c29 = arith.constant 29 : index
    %34 = memref.load %arg1[%c29] : memref<98xf32, #tpu.memory_space<smem>>
    %c30 = arith.constant 30 : index
    %35 = memref.load %arg1[%c30] : memref<98xf32, #tpu.memory_space<smem>>
    %c31 = arith.constant 31 : index
    %36 = memref.load %arg1[%c31] : memref<98xf32, #tpu.memory_space<smem>>
    %c32 = arith.constant 32 : index
    %37 = memref.load %arg1[%c32] : memref<98xf32, #tpu.memory_space<smem>>
    %c33 = arith.constant 33 : index
    %38 = memref.load %arg1[%c33] : memref<98xf32, #tpu.memory_space<smem>>
    %c34 = arith.constant 34 : index
    %39 = memref.load %arg1[%c34] : memref<98xf32, #tpu.memory_space<smem>>
    %c35 = arith.constant 35 : index
    %40 = memref.load %arg1[%c35] : memref<98xf32, #tpu.memory_space<smem>>
    %c36 = arith.constant 36 : index
    %41 = memref.load %arg1[%c36] : memref<98xf32, #tpu.memory_space<smem>>
    %c37 = arith.constant 37 : index
    %42 = memref.load %arg1[%c37] : memref<98xf32, #tpu.memory_space<smem>>
    %c38 = arith.constant 38 : index
    %43 = memref.load %arg1[%c38] : memref<98xf32, #tpu.memory_space<smem>>
    %c39 = arith.constant 39 : index
    %44 = memref.load %arg1[%c39] : memref<98xf32, #tpu.memory_space<smem>>
    %c40 = arith.constant 40 : index
    %45 = memref.load %arg1[%c40] : memref<98xf32, #tpu.memory_space<smem>>
    %c41 = arith.constant 41 : index
    %46 = memref.load %arg1[%c41] : memref<98xf32, #tpu.memory_space<smem>>
    %c42 = arith.constant 42 : index
    %47 = memref.load %arg1[%c42] : memref<98xf32, #tpu.memory_space<smem>>
    %c43 = arith.constant 43 : index
    %48 = memref.load %arg1[%c43] : memref<98xf32, #tpu.memory_space<smem>>
    %c44 = arith.constant 44 : index
    %49 = memref.load %arg1[%c44] : memref<98xf32, #tpu.memory_space<smem>>
    %c45 = arith.constant 45 : index
    %50 = memref.load %arg1[%c45] : memref<98xf32, #tpu.memory_space<smem>>
    %c46 = arith.constant 46 : index
    %51 = memref.load %arg1[%c46] : memref<98xf32, #tpu.memory_space<smem>>
    %c47 = arith.constant 47 : index
    %52 = memref.load %arg1[%c47] : memref<98xf32, #tpu.memory_space<smem>>
    %c48 = arith.constant 48 : index
    %53 = memref.load %arg1[%c48] : memref<98xf32, #tpu.memory_space<smem>>
    %c49 = arith.constant 49 : index
    %54 = memref.load %arg1[%c49] : memref<98xf32, #tpu.memory_space<smem>>
    %c50 = arith.constant 50 : index
    %55 = memref.load %arg1[%c50] : memref<98xf32, #tpu.memory_space<smem>>
    %c51 = arith.constant 51 : index
    %56 = memref.load %arg1[%c51] : memref<98xf32, #tpu.memory_space<smem>>
    %c52 = arith.constant 52 : index
    %57 = memref.load %arg1[%c52] : memref<98xf32, #tpu.memory_space<smem>>
    %c53 = arith.constant 53 : index
    %58 = memref.load %arg1[%c53] : memref<98xf32, #tpu.memory_space<smem>>
    %c54 = arith.constant 54 : index
    %59 = memref.load %arg1[%c54] : memref<98xf32, #tpu.memory_space<smem>>
    %c55 = arith.constant 55 : index
    %60 = memref.load %arg1[%c55] : memref<98xf32, #tpu.memory_space<smem>>
    %c56 = arith.constant 56 : index
    %61 = memref.load %arg1[%c56] : memref<98xf32, #tpu.memory_space<smem>>
    %c57 = arith.constant 57 : index
    %62 = memref.load %arg1[%c57] : memref<98xf32, #tpu.memory_space<smem>>
    %c58 = arith.constant 58 : index
    %63 = memref.load %arg1[%c58] : memref<98xf32, #tpu.memory_space<smem>>
    %c59 = arith.constant 59 : index
    %64 = memref.load %arg1[%c59] : memref<98xf32, #tpu.memory_space<smem>>
    %c60 = arith.constant 60 : index
    %65 = memref.load %arg1[%c60] : memref<98xf32, #tpu.memory_space<smem>>
    %c61 = arith.constant 61 : index
    %66 = memref.load %arg1[%c61] : memref<98xf32, #tpu.memory_space<smem>>
    %c62 = arith.constant 62 : index
    %67 = memref.load %arg1[%c62] : memref<98xf32, #tpu.memory_space<smem>>
    %c63 = arith.constant 63 : index
    %68 = memref.load %arg1[%c63] : memref<98xf32, #tpu.memory_space<smem>>
    %c64 = arith.constant 64 : index
    %69 = memref.load %arg1[%c64] : memref<98xf32, #tpu.memory_space<smem>>
    %c65 = arith.constant 65 : index
    %70 = memref.load %arg1[%c65] : memref<98xf32, #tpu.memory_space<smem>>
    %c66 = arith.constant 66 : index
    %71 = memref.load %arg1[%c66] : memref<98xf32, #tpu.memory_space<smem>>
    %c67 = arith.constant 67 : index
    %72 = memref.load %arg1[%c67] : memref<98xf32, #tpu.memory_space<smem>>
    %c68 = arith.constant 68 : index
    %73 = memref.load %arg1[%c68] : memref<98xf32, #tpu.memory_space<smem>>
    %c69 = arith.constant 69 : index
    %74 = memref.load %arg1[%c69] : memref<98xf32, #tpu.memory_space<smem>>
    %c70 = arith.constant 70 : index
    %75 = memref.load %arg1[%c70] : memref<98xf32, #tpu.memory_space<smem>>
    %c71 = arith.constant 71 : index
    %76 = memref.load %arg1[%c71] : memref<98xf32, #tpu.memory_space<smem>>
    %c72 = arith.constant 72 : index
    %77 = memref.load %arg1[%c72] : memref<98xf32, #tpu.memory_space<smem>>
    %c73 = arith.constant 73 : index
    %78 = memref.load %arg1[%c73] : memref<98xf32, #tpu.memory_space<smem>>
    %c74 = arith.constant 74 : index
    %79 = memref.load %arg1[%c74] : memref<98xf32, #tpu.memory_space<smem>>
    %c75 = arith.constant 75 : index
    %80 = memref.load %arg1[%c75] : memref<98xf32, #tpu.memory_space<smem>>
    %c76 = arith.constant 76 : index
    %81 = memref.load %arg1[%c76] : memref<98xf32, #tpu.memory_space<smem>>
    %c77 = arith.constant 77 : index
    %82 = memref.load %arg1[%c77] : memref<98xf32, #tpu.memory_space<smem>>
    %c78 = arith.constant 78 : index
    %83 = memref.load %arg1[%c78] : memref<98xf32, #tpu.memory_space<smem>>
    %c79 = arith.constant 79 : index
    %84 = memref.load %arg1[%c79] : memref<98xf32, #tpu.memory_space<smem>>
    %c80 = arith.constant 80 : index
    %85 = memref.load %arg1[%c80] : memref<98xf32, #tpu.memory_space<smem>>
    %c81 = arith.constant 81 : index
    %86 = memref.load %arg1[%c81] : memref<98xf32, #tpu.memory_space<smem>>
    %c82 = arith.constant 82 : index
    %87 = memref.load %arg1[%c82] : memref<98xf32, #tpu.memory_space<smem>>
    %c83 = arith.constant 83 : index
    %88 = memref.load %arg1[%c83] : memref<98xf32, #tpu.memory_space<smem>>
    %c84 = arith.constant 84 : index
    %89 = memref.load %arg1[%c84] : memref<98xf32, #tpu.memory_space<smem>>
    %c85 = arith.constant 85 : index
    %90 = memref.load %arg1[%c85] : memref<98xf32, #tpu.memory_space<smem>>
    %c86 = arith.constant 86 : index
    %91 = memref.load %arg1[%c86] : memref<98xf32, #tpu.memory_space<smem>>
    %c87 = arith.constant 87 : index
    %92 = memref.load %arg1[%c87] : memref<98xf32, #tpu.memory_space<smem>>
    %c88 = arith.constant 88 : index
    %93 = memref.load %arg1[%c88] : memref<98xf32, #tpu.memory_space<smem>>
    %c89 = arith.constant 89 : index
    %94 = memref.load %arg1[%c89] : memref<98xf32, #tpu.memory_space<smem>>
    %c90 = arith.constant 90 : index
    %95 = memref.load %arg1[%c90] : memref<98xf32, #tpu.memory_space<smem>>
    %c91 = arith.constant 91 : index
    %96 = memref.load %arg1[%c91] : memref<98xf32, #tpu.memory_space<smem>>
    %c92 = arith.constant 92 : index
    %97 = memref.load %arg1[%c92] : memref<98xf32, #tpu.memory_space<smem>>
    %c93 = arith.constant 93 : index
    %98 = memref.load %arg1[%c93] : memref<98xf32, #tpu.memory_space<smem>>
    %c94 = arith.constant 94 : index
    %99 = memref.load %arg1[%c94] : memref<98xf32, #tpu.memory_space<smem>>
    %c95 = arith.constant 95 : index
    %100 = memref.load %arg1[%c95] : memref<98xf32, #tpu.memory_space<smem>>
    %c96 = arith.constant 96 : index
    %101 = memref.load %arg1[%c96] : memref<98xf32, #tpu.memory_space<smem>>
    %c97 = arith.constant 97 : index
    %102 = memref.load %arg1[%c97] : memref<98xf32, #tpu.memory_space<smem>>
    %c0_5 = arith.constant 0 : index
    %103 = memref.load %arg2[%c0_5] : memref<1xf32, #tpu.memory_space<smem>>
    %c0_6 = arith.constant 0 : index
    %c0_7 = arith.constant 0 : index
    %104 = vector.load %arg3[%c0_6, %c0_7] : memref<14x256xf32, #tpu.memory_space<vmem>>, vector<1x256xf32>
    %c1_8 = arith.constant 1 : index
    %c0_9 = arith.constant 0 : index
    %105 = vector.load %arg3[%c1_8, %c0_9] : memref<14x256xf32, #tpu.memory_space<vmem>>, vector<1x256xf32>
    %c2_10 = arith.constant 2 : index
    %c0_11 = arith.constant 0 : index
    %106 = vector.load %arg3[%c2_10, %c0_11] : memref<14x256xf32, #tpu.memory_space<vmem>>, vector<1x256xf32>
    %c4_12 = arith.constant 4 : index
    %c0_13 = arith.constant 0 : index
    %107 = vector.load %arg3[%c4_12, %c0_13] : memref<14x256xf32, #tpu.memory_space<vmem>>, vector<1x256xf32>
    %c5_14 = arith.constant 5 : index
    %c0_15 = arith.constant 0 : index
    %108 = vector.load %arg3[%c5_14, %c0_15] : memref<14x256xf32, #tpu.memory_space<vmem>>, vector<1x256xf32>
    %c6_16 = arith.constant 6 : index
    %c0_17 = arith.constant 0 : index
    %109 = vector.load %arg3[%c6_16, %c0_17] : memref<14x256xf32, #tpu.memory_space<vmem>>, vector<1x256xf32>
    %c7_18 = arith.constant 7 : index
    %c0_19 = arith.constant 0 : index
    %110 = vector.load %arg3[%c7_18, %c0_19] : memref<14x256xf32, #tpu.memory_space<vmem>>, vector<1x256xf32>
    %c8_20 = arith.constant 8 : index
    %c0_21 = arith.constant 0 : index
    %111 = vector.load %arg3[%c8_20, %c0_21] : memref<14x256xf32, #tpu.memory_space<vmem>>, vector<1x256xf32>
    %c9_22 = arith.constant 9 : index
    %c0_23 = arith.constant 0 : index
    %112 = vector.load %arg3[%c9_22, %c0_23] : memref<14x256xf32, #tpu.memory_space<vmem>>, vector<1x256xf32>
    %c11_24 = arith.constant 11 : index
    %c0_25 = arith.constant 0 : index
    %113 = vector.load %arg3[%c11_24, %c0_25] : memref<14x256xf32, #tpu.memory_space<vmem>>, vector<1x256xf32>
    %c12_26 = arith.constant 12 : index
    %c0_27 = arith.constant 0 : index
    %114 = vector.load %arg3[%c12_26, %c0_27] : memref<14x256xf32, #tpu.memory_space<vmem>>, vector<1x256xf32>
    %c13_28 = arith.constant 13 : index
    %c0_29 = arith.constant 0 : index
    %115 = vector.load %arg3[%c13_28, %c0_29] : memref<14x256xf32, #tpu.memory_space<vmem>>, vector<1x256xf32>
    %c3_i32 = arith.constant 3 : i32
    %116 = tpu.dynamic_rotate %4 by %c3_i32 dim 1 : vector<1x256xf32>, i32 -> vector<1x256xf32>
    %117 = arith.mulf %116, %104 : vector<1x256xf32>
    %c2_i32 = arith.constant 2 : i32
    %118 = tpu.dynamic_rotate %4 by %c2_i32 dim 1 : vector<1x256xf32>, i32 -> vector<1x256xf32>
    %119 = arith.mulf %118, %105 : vector<1x256xf32>
    %c1_i32 = arith.constant 1 : i32
    %120 = tpu.dynamic_rotate %4 by %c1_i32 dim 1 : vector<1x256xf32>, i32 -> vector<1x256xf32>
    %121 = arith.mulf %120, %106 : vector<1x256xf32>
    %c255_i32 = arith.constant 255 : i32
    %122 = tpu.dynamic_rotate %4 by %c255_i32 dim 1 : vector<1x256xf32>, i32 -> vector<1x256xf32>
    %123 = arith.mulf %122, %107 : vector<1x256xf32>
    %c254_i32 = arith.constant 254 : i32
    %124 = tpu.dynamic_rotate %4 by %c254_i32 dim 1 : vector<1x256xf32>, i32 -> vector<1x256xf32>
    %125 = arith.mulf %124, %108 : vector<1x256xf32>
    %c253_i32 = arith.constant 253 : i32
    %126 = tpu.dynamic_rotate %4 by %c253_i32 dim 1 : vector<1x256xf32>, i32 -> vector<1x256xf32>
    %127 = arith.mulf %126, %109 : vector<1x256xf32>
    %128 = vector.broadcast %5 : f32 to vector<1x256xf32>
    %129 = arith.mulf %128, %117 : vector<1x256xf32>
    %130 = vector.broadcast %6 : f32 to vector<1x256xf32>
    %131 = arith.mulf %130, %119 : vector<1x256xf32>
    %132 = arith.addf %129, %131 : vector<1x256xf32>
    %133 = vector.broadcast %7 : f32 to vector<1x256xf32>
    %134 = arith.mulf %133, %121 : vector<1x256xf32>
    %135 = arith.addf %132, %134 : vector<1x256xf32>
    %136 = vector.broadcast %8 : f32 to vector<1x256xf32>
    %137 = arith.mulf %136, %4 : vector<1x256xf32>
    %138 = arith.addf %135, %137 : vector<1x256xf32>
    %139 = vector.broadcast %9 : f32 to vector<1x256xf32>
    %140 = arith.mulf %139, %123 : vector<1x256xf32>
    %141 = arith.addf %138, %140 : vector<1x256xf32>
    %142 = vector.broadcast %10 : f32 to vector<1x256xf32>
    %143 = arith.mulf %142, %125 : vector<1x256xf32>
    %144 = arith.addf %141, %143 : vector<1x256xf32>
    %145 = vector.broadcast %11 : f32 to vector<1x256xf32>
    %146 = arith.mulf %145, %127 : vector<1x256xf32>
    %147 = arith.addf %144, %146 : vector<1x256xf32>
    %148 = vector.broadcast %12 : f32 to vector<1x256xf32>
    %149 = arith.mulf %148, %117 : vector<1x256xf32>
    %150 = vector.broadcast %13 : f32 to vector<1x256xf32>
    %151 = arith.mulf %150, %119 : vector<1x256xf32>
    %152 = arith.addf %149, %151 : vector<1x256xf32>
    %153 = vector.broadcast %14 : f32 to vector<1x256xf32>
    %154 = arith.mulf %153, %121 : vector<1x256xf32>
    %155 = arith.addf %152, %154 : vector<1x256xf32>
    %156 = vector.broadcast %15 : f32 to vector<1x256xf32>
    %157 = arith.mulf %156, %4 : vector<1x256xf32>
    %158 = arith.addf %155, %157 : vector<1x256xf32>
    %159 = vector.broadcast %16 : f32 to vector<1x256xf32>
    %160 = arith.mulf %159, %123 : vector<1x256xf32>
    %161 = arith.addf %158, %160 : vector<1x256xf32>
    %162 = vector.broadcast %17 : f32 to vector<1x256xf32>
    %163 = arith.mulf %162, %125 : vector<1x256xf32>
    %164 = arith.addf %161, %163 : vector<1x256xf32>
    %165 = vector.broadcast %18 : f32 to vector<1x256xf32>
    %166 = arith.mulf %165, %127 : vector<1x256xf32>
    %167 = arith.addf %164, %166 : vector<1x256xf32>
    %168 = vector.broadcast %19 : f32 to vector<1x256xf32>
    %169 = arith.mulf %168, %117 : vector<1x256xf32>
    %170 = vector.broadcast %20 : f32 to vector<1x256xf32>
    %171 = arith.mulf %170, %119 : vector<1x256xf32>
    %172 = arith.addf %169, %171 : vector<1x256xf32>
    %173 = vector.broadcast %21 : f32 to vector<1x256xf32>
    %174 = arith.mulf %173, %121 : vector<1x256xf32>
    %175 = arith.addf %172, %174 : vector<1x256xf32>
    %176 = vector.broadcast %22 : f32 to vector<1x256xf32>
    %177 = arith.mulf %176, %4 : vector<1x256xf32>
    %178 = arith.addf %175, %177 : vector<1x256xf32>
    %179 = vector.broadcast %23 : f32 to vector<1x256xf32>
    %180 = arith.mulf %179, %123 : vector<1x256xf32>
    %181 = arith.addf %178, %180 : vector<1x256xf32>
    %182 = vector.broadcast %24 : f32 to vector<1x256xf32>
    %183 = arith.mulf %182, %125 : vector<1x256xf32>
    %184 = arith.addf %181, %183 : vector<1x256xf32>
    %185 = vector.broadcast %25 : f32 to vector<1x256xf32>
    %186 = arith.mulf %185, %127 : vector<1x256xf32>
    %187 = arith.addf %184, %186 : vector<1x256xf32>
    %188 = vector.broadcast %26 : f32 to vector<1x256xf32>
    %189 = arith.mulf %188, %117 : vector<1x256xf32>
    %190 = vector.broadcast %27 : f32 to vector<1x256xf32>
    %191 = arith.mulf %190, %119 : vector<1x256xf32>
    %192 = arith.addf %189, %191 : vector<1x256xf32>
    %193 = vector.broadcast %28 : f32 to vector<1x256xf32>
    %194 = arith.mulf %193, %121 : vector<1x256xf32>
    %195 = arith.addf %192, %194 : vector<1x256xf32>
    %196 = vector.broadcast %29 : f32 to vector<1x256xf32>
    %197 = arith.mulf %196, %4 : vector<1x256xf32>
    %198 = arith.addf %195, %197 : vector<1x256xf32>
    %199 = vector.broadcast %30 : f32 to vector<1x256xf32>
    %200 = arith.mulf %199, %123 : vector<1x256xf32>
    %201 = arith.addf %198, %200 : vector<1x256xf32>
    %202 = vector.broadcast %31 : f32 to vector<1x256xf32>
    %203 = arith.mulf %202, %125 : vector<1x256xf32>
    %204 = arith.addf %201, %203 : vector<1x256xf32>
    %205 = vector.broadcast %32 : f32 to vector<1x256xf32>
    %206 = arith.mulf %205, %127 : vector<1x256xf32>
    %207 = arith.addf %204, %206 : vector<1x256xf32>
    %208 = vector.broadcast %33 : f32 to vector<1x256xf32>
    %209 = arith.mulf %208, %117 : vector<1x256xf32>
    %210 = vector.broadcast %34 : f32 to vector<1x256xf32>
    %211 = arith.mulf %210, %119 : vector<1x256xf32>
    %212 = arith.addf %209, %211 : vector<1x256xf32>
    %213 = vector.broadcast %35 : f32 to vector<1x256xf32>
    %214 = arith.mulf %213, %121 : vector<1x256xf32>
    %215 = arith.addf %212, %214 : vector<1x256xf32>
    %216 = vector.broadcast %36 : f32 to vector<1x256xf32>
    %217 = arith.mulf %216, %4 : vector<1x256xf32>
    %218 = arith.addf %215, %217 : vector<1x256xf32>
    %219 = vector.broadcast %37 : f32 to vector<1x256xf32>
    %220 = arith.mulf %219, %123 : vector<1x256xf32>
    %221 = arith.addf %218, %220 : vector<1x256xf32>
    %222 = vector.broadcast %38 : f32 to vector<1x256xf32>
    %223 = arith.mulf %222, %125 : vector<1x256xf32>
    %224 = arith.addf %221, %223 : vector<1x256xf32>
    %225 = vector.broadcast %39 : f32 to vector<1x256xf32>
    %226 = arith.mulf %225, %127 : vector<1x256xf32>
    %227 = arith.addf %224, %226 : vector<1x256xf32>
    %228 = vector.broadcast %40 : f32 to vector<1x256xf32>
    %229 = arith.mulf %228, %117 : vector<1x256xf32>
    %230 = vector.broadcast %41 : f32 to vector<1x256xf32>
    %231 = arith.mulf %230, %119 : vector<1x256xf32>
    %232 = arith.addf %229, %231 : vector<1x256xf32>
    %233 = vector.broadcast %42 : f32 to vector<1x256xf32>
    %234 = arith.mulf %233, %121 : vector<1x256xf32>
    %235 = arith.addf %232, %234 : vector<1x256xf32>
    %236 = vector.broadcast %43 : f32 to vector<1x256xf32>
    %237 = arith.mulf %236, %4 : vector<1x256xf32>
    %238 = arith.addf %235, %237 : vector<1x256xf32>
    %239 = vector.broadcast %44 : f32 to vector<1x256xf32>
    %240 = arith.mulf %239, %123 : vector<1x256xf32>
    %241 = arith.addf %238, %240 : vector<1x256xf32>
    %242 = vector.broadcast %45 : f32 to vector<1x256xf32>
    %243 = arith.mulf %242, %125 : vector<1x256xf32>
    %244 = arith.addf %241, %243 : vector<1x256xf32>
    %245 = vector.broadcast %46 : f32 to vector<1x256xf32>
    %246 = arith.mulf %245, %127 : vector<1x256xf32>
    %247 = arith.addf %244, %246 : vector<1x256xf32>
    %248 = vector.broadcast %47 : f32 to vector<1x256xf32>
    %249 = arith.mulf %248, %117 : vector<1x256xf32>
    %250 = vector.broadcast %48 : f32 to vector<1x256xf32>
    %251 = arith.mulf %250, %119 : vector<1x256xf32>
    %252 = arith.addf %249, %251 : vector<1x256xf32>
    %253 = vector.broadcast %49 : f32 to vector<1x256xf32>
    %254 = arith.mulf %253, %121 : vector<1x256xf32>
    %255 = arith.addf %252, %254 : vector<1x256xf32>
    %256 = vector.broadcast %50 : f32 to vector<1x256xf32>
    %257 = arith.mulf %256, %4 : vector<1x256xf32>
    %258 = arith.addf %255, %257 : vector<1x256xf32>
    %259 = vector.broadcast %51 : f32 to vector<1x256xf32>
    %260 = arith.mulf %259, %123 : vector<1x256xf32>
    %261 = arith.addf %258, %260 : vector<1x256xf32>
    %262 = vector.broadcast %52 : f32 to vector<1x256xf32>
    %263 = arith.mulf %262, %125 : vector<1x256xf32>
    %264 = arith.addf %261, %263 : vector<1x256xf32>
    %265 = vector.broadcast %53 : f32 to vector<1x256xf32>
    %266 = arith.mulf %265, %127 : vector<1x256xf32>
    %267 = arith.addf %264, %266 : vector<1x256xf32>
    %c3_i32_30 = arith.constant 3 : i32
    %268 = tpu.dynamic_rotate %2 by %c3_i32_30 dim 1 : vector<1x256xf32>, i32 -> vector<1x256xf32>
    %269 = arith.mulf %268, %104 : vector<1x256xf32>
    %c2_i32_31 = arith.constant 2 : i32
    %270 = tpu.dynamic_rotate %2 by %c2_i32_31 dim 1 : vector<1x256xf32>, i32 -> vector<1x256xf32>
    %271 = arith.mulf %270, %105 : vector<1x256xf32>
    %c1_i32_32 = arith.constant 1 : i32
    %272 = tpu.dynamic_rotate %2 by %c1_i32_32 dim 1 : vector<1x256xf32>, i32 -> vector<1x256xf32>
    %273 = arith.mulf %272, %106 : vector<1x256xf32>
    %c255_i32_33 = arith.constant 255 : i32
    %274 = tpu.dynamic_rotate %2 by %c255_i32_33 dim 1 : vector<1x256xf32>, i32 -> vector<1x256xf32>
    %275 = arith.mulf %274, %107 : vector<1x256xf32>
    %c254_i32_34 = arith.constant 254 : i32
    %276 = tpu.dynamic_rotate %2 by %c254_i32_34 dim 1 : vector<1x256xf32>, i32 -> vector<1x256xf32>
    %277 = arith.mulf %276, %108 : vector<1x256xf32>
    %c253_i32_35 = arith.constant 253 : i32
    %278 = tpu.dynamic_rotate %2 by %c253_i32_35 dim 1 : vector<1x256xf32>, i32 -> vector<1x256xf32>
    %279 = arith.mulf %278, %109 : vector<1x256xf32>
    %280 = vector.broadcast %54 : f32 to vector<1x256xf32>
    %281 = arith.mulf %280, %269 : vector<1x256xf32>
    %282 = vector.broadcast %55 : f32 to vector<1x256xf32>
    %283 = arith.mulf %282, %271 : vector<1x256xf32>
    %284 = arith.addf %281, %283 : vector<1x256xf32>
    %285 = vector.broadcast %56 : f32 to vector<1x256xf32>
    %286 = arith.mulf %285, %273 : vector<1x256xf32>
    %287 = arith.addf %284, %286 : vector<1x256xf32>
    %288 = vector.broadcast %57 : f32 to vector<1x256xf32>
    %289 = arith.mulf %288, %2 : vector<1x256xf32>
    %290 = arith.addf %287, %289 : vector<1x256xf32>
    %291 = vector.broadcast %58 : f32 to vector<1x256xf32>
    %292 = arith.mulf %291, %275 : vector<1x256xf32>
    %293 = arith.addf %290, %292 : vector<1x256xf32>
    %294 = vector.broadcast %59 : f32 to vector<1x256xf32>
    %295 = arith.mulf %294, %277 : vector<1x256xf32>
    %296 = arith.addf %293, %295 : vector<1x256xf32>
    %297 = vector.broadcast %60 : f32 to vector<1x256xf32>
    %298 = arith.mulf %297, %279 : vector<1x256xf32>
    %299 = arith.addf %296, %298 : vector<1x256xf32>
    %300 = arith.addf %147, %299 : vector<1x256xf32>
    %301 = vector.broadcast %61 : f32 to vector<1x256xf32>
    %302 = arith.mulf %301, %269 : vector<1x256xf32>
    %303 = vector.broadcast %62 : f32 to vector<1x256xf32>
    %304 = arith.mulf %303, %271 : vector<1x256xf32>
    %305 = arith.addf %302, %304 : vector<1x256xf32>
    %306 = vector.broadcast %63 : f32 to vector<1x256xf32>
    %307 = arith.mulf %306, %273 : vector<1x256xf32>
    %308 = arith.addf %305, %307 : vector<1x256xf32>
    %309 = vector.broadcast %64 : f32 to vector<1x256xf32>
    %310 = arith.mulf %309, %2 : vector<1x256xf32>
    %311 = arith.addf %308, %310 : vector<1x256xf32>
    %312 = vector.broadcast %65 : f32 to vector<1x256xf32>
    %313 = arith.mulf %312, %275 : vector<1x256xf32>
    %314 = arith.addf %311, %313 : vector<1x256xf32>
    %315 = vector.broadcast %66 : f32 to vector<1x256xf32>
    %316 = arith.mulf %315, %277 : vector<1x256xf32>
    %317 = arith.addf %314, %316 : vector<1x256xf32>
    %318 = vector.broadcast %67 : f32 to vector<1x256xf32>
    %319 = arith.mulf %318, %279 : vector<1x256xf32>
    %320 = arith.addf %317, %319 : vector<1x256xf32>
    %321 = arith.addf %167, %320 : vector<1x256xf32>
    %322 = vector.broadcast %68 : f32 to vector<1x256xf32>
    %323 = arith.mulf %322, %269 : vector<1x256xf32>
    %324 = vector.broadcast %69 : f32 to vector<1x256xf32>
    %325 = arith.mulf %324, %271 : vector<1x256xf32>
    %326 = arith.addf %323, %325 : vector<1x256xf32>
    %327 = vector.broadcast %70 : f32 to vector<1x256xf32>
    %328 = arith.mulf %327, %273 : vector<1x256xf32>
    %329 = arith.addf %326, %328 : vector<1x256xf32>
    %330 = vector.broadcast %71 : f32 to vector<1x256xf32>
    %331 = arith.mulf %330, %2 : vector<1x256xf32>
    %332 = arith.addf %329, %331 : vector<1x256xf32>
    %333 = vector.broadcast %72 : f32 to vector<1x256xf32>
    %334 = arith.mulf %333, %275 : vector<1x256xf32>
    %335 = arith.addf %332, %334 : vector<1x256xf32>
    %336 = vector.broadcast %73 : f32 to vector<1x256xf32>
    %337 = arith.mulf %336, %277 : vector<1x256xf32>
    %338 = arith.addf %335, %337 : vector<1x256xf32>
    %339 = vector.broadcast %74 : f32 to vector<1x256xf32>
    %340 = arith.mulf %339, %279 : vector<1x256xf32>
    %341 = arith.addf %338, %340 : vector<1x256xf32>
    %342 = arith.addf %187, %341 : vector<1x256xf32>
    %343 = vector.broadcast %75 : f32 to vector<1x256xf32>
    %344 = arith.mulf %343, %269 : vector<1x256xf32>
    %345 = vector.broadcast %76 : f32 to vector<1x256xf32>
    %346 = arith.mulf %345, %271 : vector<1x256xf32>
    %347 = arith.addf %344, %346 : vector<1x256xf32>
    %348 = vector.broadcast %77 : f32 to vector<1x256xf32>
    %349 = arith.mulf %348, %273 : vector<1x256xf32>
    %350 = arith.addf %347, %349 : vector<1x256xf32>
    %351 = vector.broadcast %78 : f32 to vector<1x256xf32>
    %352 = arith.mulf %351, %2 : vector<1x256xf32>
    %353 = arith.addf %350, %352 : vector<1x256xf32>
    %354 = vector.broadcast %79 : f32 to vector<1x256xf32>
    %355 = arith.mulf %354, %275 : vector<1x256xf32>
    %356 = arith.addf %353, %355 : vector<1x256xf32>
    %357 = vector.broadcast %80 : f32 to vector<1x256xf32>
    %358 = arith.mulf %357, %277 : vector<1x256xf32>
    %359 = arith.addf %356, %358 : vector<1x256xf32>
    %360 = vector.broadcast %81 : f32 to vector<1x256xf32>
    %361 = arith.mulf %360, %279 : vector<1x256xf32>
    %362 = arith.addf %359, %361 : vector<1x256xf32>
    %363 = arith.addf %207, %362 : vector<1x256xf32>
    %364 = vector.broadcast %82 : f32 to vector<1x256xf32>
    %365 = arith.mulf %364, %269 : vector<1x256xf32>
    %366 = vector.broadcast %83 : f32 to vector<1x256xf32>
    %367 = arith.mulf %366, %271 : vector<1x256xf32>
    %368 = arith.addf %365, %367 : vector<1x256xf32>
    %369 = vector.broadcast %84 : f32 to vector<1x256xf32>
    %370 = arith.mulf %369, %273 : vector<1x256xf32>
    %371 = arith.addf %368, %370 : vector<1x256xf32>
    %372 = vector.broadcast %85 : f32 to vector<1x256xf32>
    %373 = arith.mulf %372, %2 : vector<1x256xf32>
    %374 = arith.addf %371, %373 : vector<1x256xf32>
    %375 = vector.broadcast %86 : f32 to vector<1x256xf32>
    %376 = arith.mulf %375, %275 : vector<1x256xf32>
    %377 = arith.addf %374, %376 : vector<1x256xf32>
    %378 = vector.broadcast %87 : f32 to vector<1x256xf32>
    %379 = arith.mulf %378, %277 : vector<1x256xf32>
    %380 = arith.addf %377, %379 : vector<1x256xf32>
    %381 = vector.broadcast %88 : f32 to vector<1x256xf32>
    %382 = arith.mulf %381, %279 : vector<1x256xf32>
    %383 = arith.addf %380, %382 : vector<1x256xf32>
    %384 = arith.addf %227, %383 : vector<1x256xf32>
    %385 = vector.broadcast %89 : f32 to vector<1x256xf32>
    %386 = arith.mulf %385, %269 : vector<1x256xf32>
    %387 = vector.broadcast %90 : f32 to vector<1x256xf32>
    %388 = arith.mulf %387, %271 : vector<1x256xf32>
    %389 = arith.addf %386, %388 : vector<1x256xf32>
    %390 = vector.broadcast %91 : f32 to vector<1x256xf32>
    %391 = arith.mulf %390, %273 : vector<1x256xf32>
    %392 = arith.addf %389, %391 : vector<1x256xf32>
    %393 = vector.broadcast %92 : f32 to vector<1x256xf32>
    %394 = arith.mulf %393, %2 : vector<1x256xf32>
    %395 = arith.addf %392, %394 : vector<1x256xf32>
    %396 = vector.broadcast %93 : f32 to vector<1x256xf32>
    %397 = arith.mulf %396, %275 : vector<1x256xf32>
    %398 = arith.addf %395, %397 : vector<1x256xf32>
    %399 = vector.broadcast %94 : f32 to vector<1x256xf32>
    %400 = arith.mulf %399, %277 : vector<1x256xf32>
    %401 = arith.addf %398, %400 : vector<1x256xf32>
    %402 = vector.broadcast %95 : f32 to vector<1x256xf32>
    %403 = arith.mulf %402, %279 : vector<1x256xf32>
    %404 = arith.addf %401, %403 : vector<1x256xf32>
    %405 = arith.addf %247, %404 : vector<1x256xf32>
    %406 = vector.broadcast %96 : f32 to vector<1x256xf32>
    %407 = arith.mulf %406, %269 : vector<1x256xf32>
    %408 = vector.broadcast %97 : f32 to vector<1x256xf32>
    %409 = arith.mulf %408, %271 : vector<1x256xf32>
    %410 = arith.addf %407, %409 : vector<1x256xf32>
    %411 = vector.broadcast %98 : f32 to vector<1x256xf32>
    %412 = arith.mulf %411, %273 : vector<1x256xf32>
    %413 = arith.addf %410, %412 : vector<1x256xf32>
    %414 = vector.broadcast %99 : f32 to vector<1x256xf32>
    %415 = arith.mulf %414, %2 : vector<1x256xf32>
    %416 = arith.addf %413, %415 : vector<1x256xf32>
    %417 = vector.broadcast %100 : f32 to vector<1x256xf32>
    %418 = arith.mulf %417, %275 : vector<1x256xf32>
    %419 = arith.addf %416, %418 : vector<1x256xf32>
    %420 = vector.broadcast %101 : f32 to vector<1x256xf32>
    %421 = arith.mulf %420, %277 : vector<1x256xf32>
    %422 = arith.addf %419, %421 : vector<1x256xf32>
    %423 = vector.broadcast %102 : f32 to vector<1x256xf32>
    %424 = arith.mulf %423, %279 : vector<1x256xf32>
    %425 = arith.addf %422, %424 : vector<1x256xf32>
    %426 = arith.addf %267, %425 : vector<1x256xf32>
    %427 = vector.broadcast %103 : f32 to vector<1x256xf32>
    %c48_i32 = arith.constant 48 : i32
    %428 = tpu.dynamic_rotate %300 by %c48_i32 dim 1 : vector<1x256xf32>, i32 -> vector<1x256xf32>
    %429 = arith.mulf %428, %110 : vector<1x256xf32>
    %430 = arith.addf %427, %429 : vector<1x256xf32>
    %c32_i32 = arith.constant 32 : i32
    %431 = tpu.dynamic_rotate %321 by %c32_i32 dim 1 : vector<1x256xf32>, i32 -> vector<1x256xf32>
    %432 = arith.mulf %431, %111 : vector<1x256xf32>
    %433 = arith.addf %430, %432 : vector<1x256xf32>
    %c16_i32 = arith.constant 16 : i32
    %434 = tpu.dynamic_rotate %342 by %c16_i32 dim 1 : vector<1x256xf32>, i32 -> vector<1x256xf32>
    %435 = arith.mulf %434, %112 : vector<1x256xf32>
    %436 = arith.addf %433, %435 : vector<1x256xf32>
    %437 = arith.addf %436, %363 : vector<1x256xf32>
    %c240_i32 = arith.constant 240 : i32
    %438 = tpu.dynamic_rotate %384 by %c240_i32 dim 1 : vector<1x256xf32>, i32 -> vector<1x256xf32>
    %439 = arith.mulf %438, %113 : vector<1x256xf32>
    %440 = arith.addf %437, %439 : vector<1x256xf32>
    %c224_i32 = arith.constant 224 : i32
    %441 = tpu.dynamic_rotate %405 by %c224_i32 dim 1 : vector<1x256xf32>, i32 -> vector<1x256xf32>
    %442 = arith.mulf %441, %114 : vector<1x256xf32>
    %443 = arith.addf %440, %442 : vector<1x256xf32>
    %c208_i32 = arith.constant 208 : i32
    %444 = tpu.dynamic_rotate %426 by %c208_i32 dim 1 : vector<1x256xf32>, i32 -> vector<1x256xf32>
    %445 = arith.mulf %444, %115 : vector<1x256xf32>
    %446 = arith.addf %443, %445 : vector<1x256xf32>
    %447 = arith.negf %446 : vector<1x256xf32>
    %448 = math.exp %447 : vector<1x256xf32>
    %cst_36 = arith.constant 1.000000e+00 : f32
    %449 = vector.broadcast %cst_36 : f32 to vector<1x256xf32>
    %450 = arith.addf %449, %448 : vector<1x256xf32>
    %451 = arith.divf %449, %450 : vector<1x256xf32>
    %452 = vector.shape_cast %451 : vector<1x256xf32> to vector<1x1x256xf32>
    %c0_37 = arith.constant 0 : index
    %c0_38 = arith.constant 0 : index
    %c0_39 = arith.constant 0 : index
    %453 = vector.load %arg4[%c0_37, %c0_38, %c0_39] : memref<1x4x256xf32, #tpu.memory_space<vmem>>, vector<1x4x256xf32>
    %454 = vector.broadcast %452 : vector<1x1x256xf32> to vector<1x4x256xf32>
    %455 = arith.mulf %453, %454 : vector<1x4x256xf32>
    %c0_40 = arith.constant 0 : index
    %c0_41 = arith.constant 0 : index
    %c0_42 = arith.constant 0 : index
    %456 = vector.load %arg5[%c0_40, %c0_41, %c0_42] : memref<1x4x256xf32, #tpu.memory_space<vmem>>, vector<1x4x256xf32>
    tpu.vector_store %arg5[%c0_40, %c0_41, %c0_42], %455 {strides = array<i32>} : memref<1x4x256xf32, #tpu.memory_space<vmem>>, vector<1x4x256xf32>,
    return
  }
  func.func @transform_0(%arg0: i32) -> i32 {
    %c0_i32 = arith.constant 0 : i32
    %c0_i32_0 = arith.constant 0 : i32
    return %c0_i32 : i32
  }
  func.func @transform_1(%arg0: i32) -> i32 {
    %c0_i32 = arith.constant 0 : i32
    %c0_i32_0 = arith.constant 0 : i32
    return %c0_i32 : i32
  }
  func.func @transform_2(%arg0: i32) -> (i32, i32) {
    %c0_i32 = arith.constant 0 : i32
    %c0_i32_0 = arith.constant 0 : i32
    %c0_i32_1 = arith.constant 0 : i32
    return %c0_i32, %c0_i32_0 : i32, i32
  }
  func.func @transform_3(%arg0: i32) -> (i32, i32, i32) {
    %c0_i32 = arith.constant 0 : i32
    %c0_i32_0 = arith.constant 0 : i32
    %c0_i32_1 = arith.constant 0 : i32
    return %arg0, %c0_i32, %c0_i32_0 : i32, i32, i32
  }
  func.func @transform_4(%arg0: i32) -> (i32, i32, i32) {
    %c0_i32 = arith.constant 0 : i32
    %c0_i32_0 = arith.constant 0 : i32
    %c0_i32_1 = arith.constant 0 : i32
    return %arg0, %c0_i32, %c0_i32_0 : i32, i32, i32
  }
}

</mosaic_0001>

<llo_original>
// kernel: tpu_custom_call.1
$region0: #{tpu_custom_call.1}
  #allocation0 [shape = 'u32[]', space=smem, size = 0x4, offset = 0x4, fixed_abs, tag = 'smem constant byte address 0x4 - core index']
  #allocation1 [shape = 'u32[72,128]{1,0:T(1,128)}', space=vmem, size = 0x9000, scoped, tag = 'internal scratch']
  #allocation2 [shape = 'f32[1,256]{1,0:T(1,128)}', space=vmem, size = 0x400, scoped, tag = 'scratch operand']
  #allocation3 [shape = 'f32[1,256]{1,0:T(1,128)}', space=vmem, size = 0x400, scoped, tag = 'scratch operand']
  #allocation4 [shape = 'f32[1]{0:T(128)S(6)}', space=smem, size = 0x200, scoped, tag = 'scoped memory for tpu_custom_call.1']
  %s0 = inlined_call_operand.vmem [shape: f32[98], index: 0, kind: input, shape index: {}]
  %s1 = inlined_call_operand.<no memory space> [shape: f32[1], index: 1, kind: input, shape index: {}]
  %s2 = inlined_call_operand.hbm [shape: f32[14,256], index: 2, kind: input, shape index: {}]
  %s3 = inlined_call_operand.hbm [shape: f32[2,4,256], index: 3, kind: input, shape index: {}]
  %s4 = inlined_call_operand.hbm [shape: f32[2,4,256], index: 4, kind: output, shape index: {}]
  %s5 = sld [smem:[#allocation0]]
  $region61: #{tpu_custom_call.1} parent=0
    _
  %s7 = ssub.s32 1, %s5
  %s8 = scalar_select 0, %s7, %s5
  %9 = sst [smem:[#allocation4]] %s1
  $region1: #{tpu_custom_call.1} parent=0
    #allocation5 [shape = 'u8[512]{0}', space=smem, size = 0x200, scoped, tag = 'input window, operand 0, single buffered']
    #allocation6 [shape = 's32[2]{0}', space=sflag, size = 0x8, scoped, tag = 'scoped memory for tpu_custom_call.1']
    #allocation7 [shape = 's32[2]{0}', space=sflag, size = 0x8, scoped, tag = 'scoped memory for tpu_custom_call.1']
    #allocation8 [shape = 's32[2]{0}', space=sflag, size = 0x8, scoped, tag = 'scoped memory for tpu_custom_call.1']
    #allocation9 [shape = 'u8[16384]{0}', space=vmem, size = 0x4000, scoped, tag = 'input window, operand 2, single buffered']
    #allocation10 [shape = 'u8[8192]{0}', space=vmem, size = 0x2000, scoped, tag = 'input window, operand 3']
    #allocation11 [shape = 's32[2]{0}', space=sflag, size = 0x8, scoped, tag = 'scoped memory for tpu_custom_call.1']
    #allocation12 [shape = 'u8[8192]{0}', space=vmem, size = 0x2000, scoped, tag = 'output window, operand 0']
    %10 = vsyncpa [#allocation8], 0
    %11 = vsyncpa [#allocation6], 0
    %12 = vsyncpa [#allocation11], 0
    %s13 = scalar_lea.sflag [#allocation11], 1
    %14 = vsyncpa %s13, 0
    %15 = vsyncpa [#allocation7], 0
    %s16 = scalar_lea.sflag [#allocation7], 1
    %17 = vsyncpa %s16, 0
    loop: start=0, step=1, limit=4
    $region2: #{tpu_custom_call.1} parent=1 // loop_pre_header
      _
    $region3: #{tpu_custom_call.1} parent=1 // loop_header
      %s19 = sphi 0, %s23
      %p20 = scmp.ge.s32.totalorder %s19, 4
      %s27 = sphi 0, %s27
      %s29 = sphi 0, %s27
      %s30 = sphi 0, %s29
      %s44 = sphi 0, %s30
      %s48 = sphi 0, %s48
      %s50 = sphi 0, %s48
      %s51 = sphi 0, %s50
      %s65 = sphi 0, %s51
      %s69 = sphi 0, %s69
      %s71 = sphi 0, %s69
      %s72 = sphi 0, %s71
      %s86 = sphi 0, %s72
      %s92 = sphi 0, %s94
      %s95 = sphi 0, %s92
      %s96 = sphi 0, %s95
      %s112 = sphi 0, %s96
      %s118 = sphi 0, %s120
      %s121 = sphi 0, %s118
      %s122 = sphi 0, %s121
      %s138 = sphi 0, %s122
    $region4: #{tpu_custom_call.1} parent=1 // loop_header_branch
      %22 = sbr.rel (%p20) target = $region8
    $region5: #{tpu_custom_call.1} parent=1 // loop_body
      %s24 = ssub.s32 %s19, 1
      %s25 = ssub.s32 %s19, 2
      %s26 = sadd.s32 %s19, 1
      %s28 = sadd.s32 %s27, 1
      %p31 = scmp.eq.s32.totalorder %s19, 1
      %p32 = scmp.ne.s32.totalorder %s27, %s29
      %p33 = scmp.eq.s32.totalorder %s19, 0
      %p34 = por %p32, %p33
      %p35 = scmp.ne.s32.totalorder %s27, %s29
      %p36 = scmp.eq.s32.totalorder %s24, 1
      %p37 = por %p35, %p36
      %p38 = scmp.ne.s32.totalorder %s29, %s30
      %p39 = scmp.eq.s32.totalorder %s24, 0
      %p40 = por %p38, %p39
      %p41 = scmp.ne.s32.totalorder %s29, %s30
      %p42 = scmp.eq.s32.totalorder %s25, 1
      %p43 = por %p41, %p42
      %p45 = scmp.ne.s32.totalorder %s30, %s44
      %p46 = scmp.eq.s32.totalorder %s25, 0
      %p47 = por %p45, %p46
      %s49 = sadd.s32 %s48, 1
      %p52 = scmp.eq.s32.totalorder %s19, 1
      %p53 = scmp.ne.s32.totalorder %s48, %s50
      %p54 = scmp.eq.s32.totalorder %s19, 0
      %p55 = por %p53, %p54
      %p56 = scmp.ne.s32.totalorder %s48, %s50
      %p57 = scmp.eq.s32.totalorder %s24, 1
      %p58 = por %p56, %p57
      %p59 = scmp.ne.s32.totalorder %s50, %s51
      %p60 = scmp.eq.s32.totalorder %s24, 0
      %p61 = por %p59, %p60
      %p62 = scmp.ne.s32.totalorder %s50, %s51
      %p63 = scmp.eq.s32.totalorder %s25, 1
      %p64 = por %p62, %p63
      %p66 = scmp.ne.s32.totalorder %s51, %s65
      %p67 = scmp.eq.s32.totalorder %s25, 0
      %p68 = por %p66, %p67
      %s70 = sadd.s32 %s69, 1
      %p73 = scmp.eq.s32.totalorder %s19, 1
      %p74 = scmp.ne.s32.totalorder %s69, %s71
      %p75 = scmp.eq.s32.totalorder %s19, 0
      %p76 = por %p74, %p75
      %p77 = scmp.ne.s32.totalorder %s69, %s71
      %p78 = scmp.eq.s32.totalorder %s24, 1
      %p79 = por %p77, %p78
      %p80 = scmp.ne.s32.totalorder %s71, %s72
      %p81 = scmp.eq.s32.totalorder %s24, 0
      %p82 = por %p80, %p81
      %p83 = scmp.ne.s32.totalorder %s71, %s72
      %p84 = scmp.eq.s32.totalorder %s25, 1
      %p85 = por %p83, %p84
      %p87 = scmp.ne.s32.totalorder %s72, %s86
      %p88 = scmp.eq.s32.totalorder %s25, 0
      %p89 = por %p87, %p88
      %s90 = ssub.s32 %s19, %s26
      %p91 = scmp.eq.s32.totalorder %s90, 0
      %s93 = sadd.s32 %s92, 1
      %s94 = scalar_select %p91, %s92, %s93
      %p97 = pneg %p91
      %p98 = scmp.eq.s32.totalorder %s19, 1
      %p99 = por %p97, %p98
      %p100 = scmp.ne.s32.totalorder %s92, %s95
      %p101 = scmp.eq.s32.totalorder %s19, 0
      %p102 = por %p100, %p101
      %p103 = scmp.ne.s32.totalorder %s92, %s95
      %p104 = scmp.eq.s32.totalorder %s24, 1
      %p105 = por %p103, %p104
      %p106 = scmp.ne.s32.totalorder %s95, %s96
      %p107 = scmp.eq.s32.totalorder %s24, 0
      %p108 = por %p106, %p107
      %p109 = scmp.ne.s32.totalorder %s95, %s96
      %p110 = scmp.eq.s32.totalorder %s25, 1
      %p111 = por %p109, %p110
      %p113 = scmp.ne.s32.totalorder %s96, %s112
      %p114 = scmp.eq.s32.totalorder %s25, 0
      %p115 = por %p113, %p114
      %s116 = ssub.s32 %s19, %s26
      %p117 = scmp.eq.s32.totalorder %s116, 0
      %s119 = sadd.s32 %s118, 1
      %s120 = scalar_select %p117, %s118, %s119
      %p123 = pneg %p117
      %p124 = scmp.eq.s32.totalorder %s19, 1
      %p125 = por %p123, %p124
      %p126 = scmp.ne.s32.totalorder %s118, %s121
      %p127 = scmp.eq.s32.totalorder %s19, 0
      %p128 = por %p126, %p127
      %p129 = scmp.ne.s32.totalorder %s118, %s121
      %p130 = scmp.eq.s32.totalorder %s24, 1
      %p131 = por %p129, %p130
      %p132 = scmp.ne.s32.totalorder %s121, %s122
      %p133 = scmp.eq.s32.totalorder %s24, 0
      %p134 = por %p132, %p133
      %p135 = scmp.ne.s32.totalorder %s121, %s122
      %p136 = scmp.eq.s32.totalorder %s25, 1
      %p137 = por %p135, %p136
      %p139 = scmp.ne.s32.totalorder %s122, %s138
      %p140 = scmp.eq.s32.totalorder %s25, 0
      %p141 = por %p139, %p140
      %p142 = scmp.le.s32.totalorder 1, %s19
      %p143 = scmp.lt.s32.totalorder %s19, 3
      %p144 = pnand %p142, %p143
      %p145 = pneg %p144
      // Predicated region
      $region9: #{tpu_custom_call.1} parent=5 // pred_check
        _
      $region10: #{tpu_custom_call.1} parent=5 // pred_check_branch
        %147 = sbr.rel (%p144) target = $region12
      $region11: #{tpu_custom_call.1} parent=5 // pred_region
        %s148 = ssub.s32 %s19, 1
        // Predicated region
        $region13: #{tpu_custom_call.1} parent=11 // pred_check
          %p149 = pneg %p40
        $region14: #{tpu_custom_call.1} parent=11 // pred_check_branch
          %151 = sbr.rel (%p149) target = $region16
        $region15: #{tpu_custom_call.1} parent=11 // pred_region
          %153 = vsyncadd [#allocation8], 0
          %s155 = sshll.u32 %s0, 4
          %s156 = int_to_ptr.vmem [resolvable:$true] %s155
          %158 = dma.vmem_to_smem %s156, 16, [#allocation5], [#allocation8]
        $region16: #{tpu_custom_call.1} parent=11 // pred_fallthru
          _
        // Predicated region
        $region17: #{tpu_custom_call.1} parent=11 // pred_check
          %p159 = pneg %p61
        $region18: #{tpu_custom_call.1} parent=11 // pred_check_branch
          %161 = sbr.rel (%p159) target = $region20
        $region19: #{tpu_custom_call.1} parent=11 // pred_region
          _
        $region20: #{tpu_custom_call.1} parent=11 // pred_fallthru
          _
        // Predicated region
        $region21: #{tpu_custom_call.1} parent=11 // pred_check
          %p162 = pneg %p82
        $region22: #{tpu_custom_call.1} parent=11 // pred_check_branch
          %164 = sbr.rel (%p162) target = $region24
        $region23: #{tpu_custom_call.1} parent=11 // pred_region
          %166 = vsyncadd [#allocation6], 0
          %s167 = sshll.u32 %s2, 4
          %s168 = int_to_ptr.hbm [resolvable:$true] %s167
          %s169 = sshll.u32 [#allocation9], 4
          %s170 = int_to_ptr.vmem [resolvable:$true] %s169
          %175 = dma.hbm_to_vmem [thread:$0]  %s168, 512, %s170, [#allocation6], 256, 256, 16
        $region24: #{tpu_custom_call.1} parent=11 // pred_fallthru
          _
      $region12: #{tpu_custom_call.1} parent=5 // pred_fallthru
        _
      %p176 = scmp.lt.s32.totalorder %s19, 2
      // Predicated region
      $region25: #{tpu_custom_call.1} parent=5 // pred_check
        %p177 = pneg %p176
      $region26: #{tpu_custom_call.1} parent=5 // pred_check_branch
        %179 = sbr.rel (%p177) target = $region28
      $region27: #{tpu_custom_call.1} parent=5 // pred_region
        // Predicated region
        $region29: #{tpu_custom_call.1} parent=27 // pred_check
          %p180 = pneg %p102
        $region30: #{tpu_custom_call.1} parent=27 // pred_check_branch
          %182 = sbr.rel (%p180) target = $region32
        $region31: #{tpu_custom_call.1} parent=27 // pred_region
          %s183 = sand.u32 %s92, 1
          %s184 = scalar_lea.sflag [#allocation11], %s183
          %s185 = sand.u32 %s92, 1
          %s186 = smul.addr %s185, 8
          %s187 = scalar_lea.vmem [#allocation10], %s186
          %189 = vsyncadd %s184, 0
          %s190 = smul.addr %s19, 2
          %s191 = smul.addr %s190, 4
          %s192 = scalar_lea.hbm %s3, %s191
          %s194 = sshll.u32 %s192, 4
          %s195 = int_to_ptr.hbm [resolvable:$true] %s194
          %s196 = sshll.u32 %s187, 4
          %s197 = int_to_ptr.vmem [resolvable:$true] %s196
          %199 = dma.hbm_to_vmem [thread:$0]  %s195, 128, %s197, %s184
        $region32: #{tpu_custom_call.1} parent=27 // pred_fallthru
          _
      $region28: #{tpu_custom_call.1} parent=5 // pred_fallthru
        _
      %p200 = scmp.le.s32.totalorder 1, %s19
      %p201 = scmp.lt.s32.totalorder %s19, 3
      %p202 = pnand %p200, %p201
      %p203 = pneg %p202
      // Predicated region
      $region33: #{tpu_custom_call.1} parent=5 // pred_check
        _
      $region34: #{tpu_custom_call.1} parent=5 // pred_check_branch
        %205 = sbr.rel (%p202) target = $region36
      $region35: #{tpu_custom_call.1} parent=5 // pred_region
        %s206 = ssub.s32 %s19, 1
        // Predicated region
        $region37: #{tpu_custom_call.1} parent=35 // pred_check
          %p207 = pneg %p40
        $region38: #{tpu_custom_call.1} parent=35 // pred_check_branch
          %209 = sbr.rel (%p207) target = $region40
        $region39: #{tpu_custom_call.1} parent=35 // pred_region
          %211 = dma.done [#allocation8], 16
        $region40: #{tpu_custom_call.1} parent=35 // pred_fallthru
          _
        // Predicated region
        $region41: #{tpu_custom_call.1} parent=35 // pred_check
          %p212 = pneg %p82
        $region42: #{tpu_custom_call.1} parent=35 // pred_check_branch
          %214 = sbr.rel (%p212) target = $region44
        $region43: #{tpu_custom_call.1} parent=35 // pred_region
          %216 = dma.done [#allocation6], 512
        $region44: #{tpu_custom_call.1} parent=35 // pred_fallthru
          _
        %s217 = sand.u32 %s95, 1
        %s218 = scalar_lea.sflag [#allocation11], %s217
        %s219 = sand.u32 %s95, 1
        %s220 = smul.addr %s219, 8
        %s221 = scalar_lea.vmem [#allocation10], %s220
        // Predicated region
        $region45: #{tpu_custom_call.1} parent=35 // pred_check
          %p222 = pneg %p108
        $region46: #{tpu_custom_call.1} parent=35 // pred_check_branch
          %224 = sbr.rel (%p222) target = $region48
        $region47: #{tpu_custom_call.1} parent=35 // pred_region
          %226 = dma.done %s218, 128
        $region48: #{tpu_custom_call.1} parent=35 // pred_fallthru
          _
        %227 = sfence
        %p228 = pneg %p40
        %p229 = pneg %p37
        %p230 = pneg %p61
        %p231 = pneg %p58
        %p232 = pneg %p82
        %p233 = pneg %p79
        %s234 = sand.u32 %s95, 1
        %s235 = scalar_lea.sflag [#allocation11], %s234
        %s236 = sand.u32 %s95, 1
        %s237 = smul.addr %s236, 8
        %s238 = scalar_lea.vmem [#allocation10], %s237
        %p239 = pneg %p108
        %p240 = pneg %p105
        %p241 = pneg %p134
        %p242 = pneg %p131
        %s243 = sand.u32 %s121, 1
        %s244 = scalar_lea.sflag [#allocation7], %s243
        %s245 = sand.u32 %s121, 1
        %s246 = smul.addr %s245, 8
        %s247 = scalar_lea.vmem [#allocation12], %s246
        %v248 = vld [vmem:[%s221] sm:$0xff]
        %250 = vst [vmem:[#allocation1] ss:$2 sm:$0xff] %v248
        %v251 = vld.sshfl [vmem:[#allocation1] sm:$0xff pattern:$0x75316420]
        %v252 = vld.sshfl [vmem:[#allocation1 + $0x8] sm:$0xff pattern:$0x75316420]
        %vm255 = vcmask 1043456
        %v256 = vsel %vm255, %v251, 0.0
        %v257 = vrot.slane %v256, 4
        %v258 = vadd.f32 %v256, %v257
        %v259 = vrot.slane %v258, 2
        %v260 = vadd.f32 %v258, %v259
        %v261 = vrot.slane %v260, 1
        %v262 = vadd.f32 %v260, %v261
        %v263 = vsel %vm255, %v252, 0.0
        %v264 = vrot.slane %v263, 4
        %v265 = vadd.f32 %v263, %v264
        %v266 = vrot.slane %v265, 2
        %v267 = vadd.f32 %v265, %v266
        %v268 = vrot.slane %v267, 1
        %v269 = vadd.f32 %v267, %v268
        %270 = vst [vmem:[#allocation1] ss:$2 sm:$0xff] %v248
        %v271 = vld.sshfl [vmem:[#allocation1] sm:$0xff pattern:$0x75316420]
        %v272 = vld.sshfl [vmem:[#allocation1 + $0x8] sm:$0xff pattern:$0x75316420]
        %v275 = vsel %vm255, %v271, -inf
        %v276 = vrot.slane %v275, 4
        %v277 = vmax.f32 %v275, %v276
        %v278 = vrot.slane %v277, 2
        %v279 = vmax.f32 %v277, %v278
        %v280 = vrot.slane %v279, 1
        %v281 = vmax.f32 %v279, %v280
        %v282 = vsel %vm255, %v272, -inf
        %v283 = vrot.slane %v282, 4
        %v284 = vmax.f32 %v282, %v283
        %v285 = vrot.slane %v284, 2
        %v286 = vmax.f32 %v284, %v285
        %v287 = vrot.slane %v286, 1
        %v288 = vmax.f32 %v286, %v287
        %v289 = vmul.f32 %v262, 0.25
        %v290 = vmul.f32 %v269, 0.25
        %s291 = sld [smem:[#allocation5]]
        %s292 = sld [smem:[#allocation5 + $0x1]]
        %s293 = sld [smem:[#allocation5 + $0x2]]
        %s294 = sld [smem:[#allocation5 + $0x3]]
        %s295 = sld [smem:[#allocation5 + $0x4]]
        %s296 = sld [smem:[#allocation5 + $0x5]]
        %s297 = sld [smem:[#allocation5 + $0x6]]
        %s298 = sld [smem:[#allocation5 + $0x7]]
        %s299 = sld [smem:[#allocation5 + $0x8]]
        %s300 = sld [smem:[#allocation5 + $0x9]]
        %s301 = sld [smem:[#allocation5 + $0xa]]
        %s302 = sld [smem:[#allocation5 + $0xb]]
        %s303 = sld [smem:[#allocation5 + $0xc]]
        %s304 = sld [smem:[#allocation5 + $0xd]]
        %s305 = sld [smem:[#allocation5 + $0xe]]
        %s306 = sld [smem:[#allocation5 + $0xf]]
        %s307 = sld [smem:[#allocation5 + $0x10]]
        %s308 = sld [smem:[#allocation5 + $0x11]]
        %s309 = sld [smem:[#allocation5 + $0x12]]
        %s310 = sld [smem:[#allocation5 + $0x13]]
        %s311 = sld [smem:[#allocation5 + $0x14]]
        %s312 = sld [smem:[#allocation5 + $0x15]]
        %s313 = sld [smem:[#allocation5 + $0x16]]
        %s314 = sld [smem:[#allocation5 + $0x17]]
        %s315 = sld [smem:[#allocation5 + $0x18]]
        %s316 = sld [smem:[#allocation5 + $0x19]]
        %s317 = sld [smem:[#allocation5 + $0x1a]]
        %s318 = sld [smem:[#allocation5 + $0x1b]]
        %s319 = sld [smem:[#allocation5 + $0x1c]]
        %s320 = sld [smem:[#allocation5 + $0x1d]]
        %s321 = sld [smem:[#allocation5 + $0x1e]]
        %s322 = sld [smem:[#allocation5 + $0x1f]]
        %s323 = sld [smem:[#allocation5 + $0x20]]
        %s324 = sld [smem:[#allocation5 + $0x21]]
        %s325 = sld [smem:[#allocation5 + $0x22]]
        %s326 = sld [smem:[#allocation5 + $0x23]]
        %s327 = sld [smem:[#allocation5 + $0x24]]
        %s328 = sld [smem:[#allocation5 + $0x25]]
        %s329 = sld [smem:[#allocation5 + $0x26]]
        %s330 = sld [smem:[#allocation5 + $0x27]]
        %s331 = sld [smem:[#allocation5 + $0x28]]
        %s332 = sld [smem:[#allocation5 + $0x29]]
        %s333 = sld [smem:[#allocation5 + $0x2a]]
        %s334 = sld [smem:[#allocation5 + $0x2b]]
        %s335 = sld [smem:[#allocation5 + $0x2c]]
        %s336 = sld [smem:[#allocation5 + $0x2d]]
        %s337 = sld [smem:[#allocation5 + $0x2e]]
        %s338 = sld [smem:[#allocation5 + $0x2f]]
        %s339 = sld [smem:[#allocation5 + $0x30]]
        %s340 = sld [smem:[#allocation5 + $0x31]]
        %s341 = sld [smem:[#allocation5 + $0x32]]
        %s342 = sld [smem:[#allocation5 + $0x33]]
        %s343 = sld [smem:[#allocation5 + $0x34]]
        %s344 = sld [smem:[#allocation5 + $0x35]]
        %s345 = sld [smem:[#allocation5 + $0x36]]
        %s346 = sld [smem:[#allocation5 + $0x37]]
        %s347 = sld [smem:[#allocation5 + $0x38]]
        %s348 = sld [smem:[#allocation5 + $0x39]]
        %s349 = sld [smem:[#allocation5 + $0x3a]]
        %s350 = sld [smem:[#allocation5 + $0x3b]]
        %s351 = sld [smem:[#allocation5 + $0x3c]]
        %s352 = sld [smem:[#allocation5 + $0x3d]]
        %s353 = sld [smem:[#allocation5 + $0x3e]]
        %s354 = sld [smem:[#allocation5 + $0x3f]]
        %s355 = sld [smem:[#allocation5 + $0x40]]
        %s356 = sld [smem:[#allocation5 + $0x41]]
        %s357 = sld [smem:[#allocation5 + $0x42]]
        %s358 = sld [smem:[#allocation5 + $0x43]]
        %s359 = sld [smem:[#allocation5 + $0x44]]
        %s360 = sld [smem:[#allocation5 + $0x45]]
        %s361 = sld [smem:[#allocation5 + $0x46]]
        %s362 = sld [smem:[#allocation5 + $0x47]]
        %s363 = sld [smem:[#allocation5 + $0x48]]
        %s364 = sld [smem:[#allocation5 + $0x49]]
        %s365 = sld [smem:[#allocation5 + $0x4a]]
        %s366 = sld [smem:[#allocation5 + $0x4b]]
        %s367 = sld [smem:[#allocation5 + $0x4c]]
        %s368 = sld [smem:[#allocation5 + $0x4d]]
        %s369 = sld [smem:[#allocation5 + $0x4e]]
        %s370 = sld [smem:[#allocation5 + $0x4f]]
        %s371 = sld [smem:[#allocation5 + $0x50]]
        %s372 = sld [smem:[#allocation5 + $0x51]]
        %s373 = sld [smem:[#allocation5 + $0x52]]
        %s374 = sld [smem:[#allocation5 + $0x53]]
        %s375 = sld [smem:[#allocation5 + $0x54]]
        %s376 = sld [smem:[#allocation5 + $0x55]]
        %s377 = sld [smem:[#allocation5 + $0x56]]
        %s378 = sld [smem:[#allocation5 + $0x57]]
        %s379 = sld [smem:[#allocation5 + $0x58]]
        %s380 = sld [smem:[#allocation5 + $0x59]]
        %s381 = sld [smem:[#allocation5 + $0x5a]]
        %s382 = sld [smem:[#allocation5 + $0x5b]]
        %s383 = sld [smem:[#allocation5 + $0x5c]]
        %s384 = sld [smem:[#allocation5 + $0x5d]]
        %s385 = sld [smem:[#allocation5 + $0x5e]]
        %s386 = sld [smem:[#allocation5 + $0x5f]]
        %s387 = sld [smem:[#allocation5 + $0x60]]
        %s388 = sld [smem:[#allocation5 + $0x61]]
        %s389 = sld [smem:[#allocation4]]
        %v390 = vld [vmem:[#allocation9] ss:$8 sm:$0x3]
        %s391 = scalar_lea.vmem [#allocation9], 1
        %v392 = vld [vmem:[%s391] ss:$8 sm:$0x3]
        %s393 = scalar_lea.vmem [#allocation9], 2
        %v394 = vld [vmem:[%s393] ss:$8 sm:$0x3]
        %s395 = scalar_lea.vmem [#allocation9], 4
        %v396 = vld [vmem:[%s395] ss:$8 sm:$0x3]
        %s397 = scalar_lea.vmem [#allocation9], 5
        %v398 = vld [vmem:[%s397] ss:$8 sm:$0x3]
        %s399 = scalar_lea.vmem [#allocation9], 6
        %v400 = vld [vmem:[%s399] ss:$8 sm:$0x3]
        %s401 = scalar_lea.vmem [#allocation9], 7
        %v402 = vld [vmem:[%s401] ss:$8 sm:$0x3]
        %s403 = scalar_lea.vmem [#allocation9], 16
        %v404 = vld [vmem:[%s403] ss:$8 sm:$0x3]
        %s405 = scalar_lea.vmem [#allocation9], 17
        %v406 = vld [vmem:[%s405] ss:$8 sm:$0x3]
        %s407 = scalar_lea.vmem [#allocation9], 19
        %v408 = vld [vmem:[%s407] ss:$8 sm:$0x3]
        %s409 = scalar_lea.vmem [#allocation9], 20
        %v410 = vld [vmem:[%s409] ss:$8 sm:$0x3]
        %s411 = scalar_lea.vmem [#allocation9], 21
        %v412 = vld [vmem:[%s411] ss:$8 sm:$0x3]
        %413 = vrot.lane.b32.xlu0 %v289, 3
        %v414 = vpop.permute.xlu0 %413
        %415 = vrot.lane.b32.xlu0 %v290, 3
        %v416 = vpop.permute.xlu0 %415
        %v417 = vlaneseq
        %v418 = vand.u32 %v417, 127
        %vm419 = vcmp.lt.s32.totalorder %v418, 3
        %v420 = vsel %vm419, %v414, %v416
        %v421 = vsel %vm419, %v416, %v414
        %v423 = vperm.slane %v390, 0
        %v424 = vperm.slane %v390, 1
        %v427 = vmul.f32 %v421, %v423
        %v428 = vmul.f32 %v420, %v424
        %429 = vrot.lane.b32.xlu0 %v289, 2
        %v430 = vpop.permute.xlu0 %429
        %431 = vrot.lane.b32.xlu0 %v290, 2
        %v432 = vpop.permute.xlu0 %431
        %vm433 = vcmp.lt.s32.totalorder %v418, 2
        %v434 = vsel %vm433, %v430, %v432
        %v435 = vsel %vm433, %v432, %v430
        %v437 = vperm.slane %v392, 0
        %v438 = vperm.slane %v392, 1
        %v441 = vmul.f32 %v435, %v437
        %v442 = vmul.f32 %v434, %v438
        %443 = vrot.lane.b32.xlu0 %v289, 1
        %v444 = vpop.permute.xlu0 %443
        %445 = vrot.lane.b32.xlu0 %v290, 1
        %v446 = vpop.permute.xlu0 %445
        %vm447 = vcmp.lt.s32.totalorder %v418, 1
        %v448 = vsel %vm447, %v444, %v446
        %v449 = vsel %vm447, %v446, %v444
        %v451 = vperm.slane %v394, 0
        %v452 = vperm.slane %v394, 1
        %v455 = vmul.f32 %v449, %v451
        %v456 = vmul.f32 %v448, %v452
        %457 = vrot.lane.b32.xlu0 %v289, 127
        %v458 = vpop.permute.xlu0 %457
        %459 = vrot.lane.b32.xlu0 %v290, 127
        %v460 = vpop.permute.xlu0 %459
        %vm461 = vcmp.lt.s32.totalorder %v418, 127
        %v462 = vsel %vm461, %v458, %v460
        %v463 = vsel %vm461, %v460, %v458
        %v465 = vperm.slane %v396, 0
        %v466 = vperm.slane %v396, 1
        %v469 = vmul.f32 %v462, %v465
        %v470 = vmul.f32 %v463, %v466
        %471 = vrot.lane.b32.xlu0 %v289, 126
        %v472 = vpop.permute.xlu0 %471
        %473 = vrot.lane.b32.xlu0 %v290, 126
        %v474 = vpop.permute.xlu0 %473
        %vm475 = vcmp.lt.s32.totalorder %v418, 126
        %v476 = vsel %vm475, %v472, %v474
        %v477 = vsel %vm475, %v474, %v472
        %v479 = vperm.slane %v398, 0
        %v480 = vperm.slane %v398, 1
        %v483 = vmul.f32 %v476, %v479
        %v484 = vmul.f32 %v477, %v480
        %485 = vrot.lane.b32.xlu0 %v289, 125
        %v486 = vpop.permute.xlu0 %485
        %487 = vrot.lane.b32.xlu0 %v290, 125
        %v488 = vpop.permute.xlu0 %487
        %vm489 = vcmp.lt.s32.totalorder %v418, 125
        %v490 = vsel %vm489, %v486, %v488
        %v491 = vsel %vm489, %v488, %v486
        %v493 = vperm.slane %v400, 0
        %v494 = vperm.slane %v400, 1
        %v497 = vmul.f32 %v490, %v493
        %v498 = vmul.f32 %v491, %v494
        %v499 = vstv %s291
        %v500 = vmul.f32 %v499, %v427
        %v501 = vmul.f32 %v499, %v428
        %v502 = vstv %s292
        %v503 = vmul.f32 %v502, %v441
        %v504 = vmul.f32 %v502, %v442
        %v505 = vadd.f32 %v500, %v503
        %v506 = vadd.f32 %v501, %v504
        %v507 = vstv %s293
        %v508 = vmul.f32 %v507, %v455
        %v509 = vmul.f32 %v507, %v456
        %v510 = vadd.f32 %v505, %v508
        %v511 = vadd.f32 %v506, %v509
        %v512 = vstv %s294
        %v513 = vmul.f32 %v512, %v289
        %v514 = vmul.f32 %v512, %v290
        %v515 = vadd.f32 %v510, %v513
        %v516 = vadd.f32 %v511, %v514
        %v517 = vstv %s295
        %v518 = vmul.f32 %v517, %v469
        %v519 = vmul.f32 %v517, %v470
        %v520 = vadd.f32 %v515, %v518
        %v521 = vadd.f32 %v516, %v519
        %v522 = vstv %s296
        %v523 = vmul.f32 %v522, %v483
        %v524 = vmul.f32 %v522, %v484
        %v525 = vadd.f32 %v520, %v523
        %v526 = vadd.f32 %v521, %v524
        %v527 = vstv %s297
        %v528 = vmul.f32 %v527, %v497
        %v529 = vmul.f32 %v527, %v498
        %v530 = vadd.f32 %v525, %v528
        %v531 = vadd.f32 %v526, %v529
        %v532 = vstv %s298
        %v533 = vmul.f32 %v532, %v427
        %v534 = vmul.f32 %v532, %v428
        %v535 = vstv %s299
        %v536 = vmul.f32 %v535, %v441
        %v537 = vmul.f32 %v535, %v442
        %v538 = vadd.f32 %v533, %v536
        %v539 = vadd.f32 %v534, %v537
        %v540 = vstv %s300
        %v541 = vmul.f32 %v540, %v455
        %v542 = vmul.f32 %v540, %v456
        %v543 = vadd.f32 %v538, %v541
        %v544 = vadd.f32 %v539, %v542
        %v545 = vstv %s301
        %v546 = vmul.f32 %v545, %v289
        %v547 = vmul.f32 %v545, %v290
        %v548 = vadd.f32 %v543, %v546
        %v549 = vadd.f32 %v544, %v547
        %v550 = vstv %s302
        %v551 = vmul.f32 %v550, %v469
        %v552 = vmul.f32 %v550, %v470
        %v553 = vadd.f32 %v548, %v551
        %v554 = vadd.f32 %v549, %v552
        %v555 = vstv %s303
        %v556 = vmul.f32 %v555, %v483
        %v557 = vmul.f32 %v555, %v484
        %v558 = vadd.f32 %v553, %v556
        %v559 = vadd.f32 %v554, %v557
        %v560 = vstv %s304
        %v561 = vmul.f32 %v560, %v497
        %v562 = vmul.f32 %v560, %v498
        %v563 = vadd.f32 %v558, %v561
        %v564 = vadd.f32 %v559, %v562
        %v565 = vstv %s305
        %v566 = vmul.f32 %v565, %v427
        %v567 = vmul.f32 %v565, %v428
        %v568 = vstv %s306
        %v569 = vmul.f32 %v568, %v441
        %v570 = vmul.f32 %v568, %v442
        %v571 = vadd.f32 %v566, %v569
        %v572 = vadd.f32 %v567, %v570
        %v573 = vstv %s307
        %v574 = vmul.f32 %v573, %v455
        %v575 = vmul.f32 %v573, %v456
        %v576 = vadd.f32 %v571, %v574
        %v577 = vadd.f32 %v572, %v575
        %v578 = vstv %s308
        %v579 = vmul.f32 %v578, %v289
        %v580 = vmul.f32 %v578, %v290
        %v581 = vadd.f32 %v576, %v579
        %v582 = vadd.f32 %v577, %v580
        %v583 = vstv %s309
        %v584 = vmul.f32 %v583, %v469
        %v585 = vmul.f32 %v583, %v470
        %v586 = vadd.f32 %v581, %v584
        %v587 = vadd.f32 %v582, %v585
        %v588 = vstv %s310
        %v589 = vmul.f32 %v588, %v483
        %v590 = vmul.f32 %v588, %v484
        %v591 = vadd.f32 %v586, %v589
        %v592 = vadd.f32 %v587, %v590
        %v593 = vstv %s311
        %v594 = vmul.f32 %v593, %v497
        %v595 = vmul.f32 %v593, %v498
        %v596 = vadd.f32 %v591, %v594
        %v597 = vadd.f32 %v592, %v595
        %v598 = vstv %s312
        %v599 = vmul.f32 %v598, %v427
        %v600 = vmul.f32 %v598, %v428
        %v601 = vstv %s313
        %v602 = vmul.f32 %v601, %v441
        %v603 = vmul.f32 %v601, %v442
        %v604 = vadd.f32 %v599, %v602
        %v605 = vadd.f32 %v600, %v603
        %v606 = vstv %s314
        %v607 = vmul.f32 %v606, %v455
        %v608 = vmul.f32 %v606, %v456
        %v609 = vadd.f32 %v604, %v607
        %v610 = vadd.f32 %v605, %v608
        %v611 = vstv %s315
        %v612 = vmul.f32 %v611, %v289
        %v613 = vmul.f32 %v611, %v290
        %v614 = vadd.f32 %v609, %v612
        %v615 = vadd.f32 %v610, %v613
        %v616 = vstv %s316
        %v617 = vmul.f32 %v616, %v469
        %v618 = vmul.f32 %v616, %v470
        %v619 = vadd.f32 %v614, %v617
        %v620 = vadd.f32 %v615, %v618
        %v621 = vstv %s317
        %v622 = vmul.f32 %v621, %v483
        %v623 = vmul.f32 %v621, %v484
        %v624 = vadd.f32 %v619, %v622
        %v625 = vadd.f32 %v620, %v623
        %v626 = vstv %s318
        %v627 = vmul.f32 %v626, %v497
        %v628 = vmul.f32 %v626, %v498
        %v629 = vadd.f32 %v624, %v627
        %v630 = vadd.f32 %v625, %v628
        %v631 = vstv %s319
        %v632 = vmul.f32 %v631, %v427
        %v633 = vmul.f32 %v631, %v428
        %v634 = vstv %s320
        %v635 = vmul.f32 %v634, %v441
        %v636 = vmul.f32 %v634, %v442
        %v637 = vadd.f32 %v632, %v635
        %v638 = vadd.f32 %v633, %v636
        %v639 = vstv %s321
        %v640 = vmul.f32 %v639, %v455
        %v641 = vmul.f32 %v639, %v456
        %v642 = vadd.f32 %v637, %v640
        %v643 = vadd.f32 %v638, %v641
        %v644 = vstv %s322
        %v645 = vmul.f32 %v644, %v289
        %v646 = vmul.f32 %v644, %v290
        %v647 = vadd.f32 %v642, %v645
        %v648 = vadd.f32 %v643, %v646
        %v649 = vstv %s323
        %v650 = vmul.f32 %v649, %v469
        %v651 = vmul.f32 %v649, %v470
        %v652 = vadd.f32 %v647, %v650
        %v653 = vadd.f32 %v648, %v651
        %v654 = vstv %s324
        %v655 = vmul.f32 %v654, %v483
        %v656 = vmul.f32 %v654, %v484
        %v657 = vadd.f32 %v652, %v655
        %v658 = vadd.f32 %v653, %v656
        %v659 = vstv %s325
        %v660 = vmul.f32 %v659, %v497
        %v661 = vmul.f32 %v659, %v498
        %v662 = vadd.f32 %v657, %v660
        %v663 = vadd.f32 %v658, %v661
        %v664 = vstv %s326
        %v665 = vmul.f32 %v664, %v427
        %v666 = vmul.f32 %v664, %v428
        %v667 = vstv %s327
        %v668 = vmul.f32 %v667, %v441
        %v669 = vmul.f32 %v667, %v442
        %v670 = vadd.f32 %v665, %v668
        %v671 = vadd.f32 %v666, %v669
        %v672 = vstv %s328
        %v673 = vmul.f32 %v672, %v455
        %v674 = vmul.f32 %v672, %v456
        %v675 = vadd.f32 %v670, %v673
        %v676 = vadd.f32 %v671, %v674
        %v677 = vstv %s329
        %v678 = vmul.f32 %v677, %v289
        %v679 = vmul.f32 %v677, %v290
        %v680 = vadd.f32 %v675, %v678
        %v681 = vadd.f32 %v676, %v679
        %v682 = vstv %s330
        %v683 = vmul.f32 %v682, %v469
        %v684 = vmul.f32 %v682, %v470
        %v685 = vadd.f32 %v680, %v683
        %v686 = vadd.f32 %v681, %v684
        %v687 = vstv %s331
        %v688 = vmul.f32 %v687, %v483
        %v689 = vmul.f32 %v687, %v484
        %v690 = vadd.f32 %v685, %v688
        %v691 = vadd.f32 %v686, %v689
        %v692 = vstv %s332
        %v693 = vmul.f32 %v692, %v497
        %v694 = vmul.f32 %v692, %v498
        %v695 = vadd.f32 %v690, %v693
        %v696 = vadd.f32 %v691, %v694
        %v697 = vstv %s333
        %v698 = vmul.f32 %v697, %v427
        %v699 = vmul.f32 %v697, %v428
        %v700 = vstv %s334
        %v701 = vmul.f32 %v700, %v441
        %v702 = vmul.f32 %v700, %v442
        %v703 = vadd.f32 %v698, %v701
        %v704 = vadd.f32 %v699, %v702
        %v705 = vstv %s335
        %v706 = vmul.f32 %v705, %v455
        %v707 = vmul.f32 %v705, %v456
        %v708 = vadd.f32 %v703, %v706
        %v709 = vadd.f32 %v704, %v707
        %v710 = vstv %s336
        %v711 = vmul.f32 %v710, %v289
        %v712 = vmul.f32 %v710, %v290
        %v713 = vadd.f32 %v708, %v711
        %v714 = vadd.f32 %v709, %v712
        %v715 = vstv %s337
        %v716 = vmul.f32 %v715, %v469
        %v717 = vmul.f32 %v715, %v470
        %v718 = vadd.f32 %v713, %v716
        %v719 = vadd.f32 %v714, %v717
        %v720 = vstv %s338
        %v721 = vmul.f32 %v720, %v483
        %v722 = vmul.f32 %v720, %v484
        %v723 = vadd.f32 %v718, %v721
        %v724 = vadd.f32 %v719, %v722
        %v725 = vstv %s339
        %v726 = vmul.f32 %v725, %v497
        %v727 = vmul.f32 %v725, %v498
        %v728 = vadd.f32 %v723, %v726
        %v729 = vadd.f32 %v724, %v727
        %730 = vrot.lane.b32.xlu0 %v281, 3
        %v731 = vpop.permute.xlu0 %730
        %732 = vrot.lane.b32.xlu0 %v288, 3
        %v733 = vpop.permute.xlu0 %732
        %v734 = vsel %vm419, %v731, %v733
        %v735 = vsel %vm419, %v733, %v731
        %v736 = vmul.f32 %v735, %v423
        %v737 = vmul.f32 %v734, %v424
        %738 = vrot.lane.b32.xlu0 %v281, 2
        %v739 = vpop.permute.xlu0 %738
        %740 = vrot.lane.b32.xlu0 %v288, 2
        %v741 = vpop.permute.xlu0 %740
        %v742 = vsel %vm433, %v739, %v741
        %v743 = vsel %vm433, %v741, %v739
        %v744 = vmul.f32 %v743, %v437
        %v745 = vmul.f32 %v742, %v438
        %746 = vrot.lane.b32.xlu0 %v281, 1
        %v747 = vpop.permute.xlu0 %746
        %748 = vrot.lane.b32.xlu0 %v288, 1
        %v749 = vpop.permute.xlu0 %748
        %v750 = vsel %vm447, %v747, %v749
        %v751 = vsel %vm447, %v749, %v747
        %v752 = vmul.f32 %v751, %v451
        %v753 = vmul.f32 %v750, %v452
        %754 = vrot.lane.b32.xlu0 %v281, 127
        %v755 = vpop.permute.xlu0 %754
        %756 = vrot.lane.b32.xlu0 %v288, 127
        %v757 = vpop.permute.xlu0 %756
        %v758 = vsel %vm461, %v755, %v757
        %v759 = vsel %vm461, %v757, %v755
        %v760 = vmul.f32 %v758, %v465
        %v761 = vmul.f32 %v759, %v466
        %762 = vrot.lane.b32.xlu0 %v281, 126
        %v763 = vpop.permute.xlu0 %762
        %764 = vrot.lane.b32.xlu0 %v288, 126
        %v765 = vpop.permute.xlu0 %764
        %v766 = vsel %vm475, %v763, %v765
        %v767 = vsel %vm475, %v765, %v763
        %v768 = vmul.f32 %v766, %v479
        %v769 = vmul.f32 %v767, %v480
        %770 = vrot.lane.b32.xlu0 %v281, 125
        %v771 = vpop.permute.xlu0 %770
        %772 = vrot.lane.b32.xlu0 %v288, 125
        %v773 = vpop.permute.xlu0 %772
        %v774 = vsel %vm489, %v771, %v773
        %v775 = vsel %vm489, %v773, %v771
        %v776 = vmul.f32 %v774, %v493
        %v777 = vmul.f32 %v775, %v494
        %v778 = vstv %s340
        %v779 = vmul.f32 %v778, %v736
        %v780 = vmul.f32 %v778, %v737
        %v781 = vstv %s341
        %v782 = vmul.f32 %v781, %v744
        %v783 = vmul.f32 %v781, %v745
        %v784 = vadd.f32 %v779, %v782
        %v785 = vadd.f32 %v780, %v783
        %v786 = vstv %s342
        %v787 = vmul.f32 %v786, %v752
        %v788 = vmul.f32 %v786, %v753
        %v789 = vadd.f32 %v784, %v787
        %v790 = vadd.f32 %v785, %v788
        %v791 = vstv %s343
        %v792 = vmul.f32 %v791, %v281
        %v793 = vmul.f32 %v791, %v288
        %v794 = vadd.f32 %v789, %v792
        %v795 = vadd.f32 %v790, %v793
        %v796 = vstv %s344
        %v797 = vmul.f32 %v796, %v760
        %v798 = vmul.f32 %v796, %v761
        %v799 = vadd.f32 %v794, %v797
        %v800 = vadd.f32 %v795, %v798
        %v801 = vstv %s345
        %v802 = vmul.f32 %v801, %v768
        %v803 = vmul.f32 %v801, %v769
        %v804 = vadd.f32 %v799, %v802
        %v805 = vadd.f32 %v800, %v803
        %v806 = vstv %s346
        %v807 = vmul.f32 %v806, %v776
        %v808 = vmul.f32 %v806, %v777
        %v809 = vadd.f32 %v804, %v807
        %v810 = vadd.f32 %v805, %v808
        %v811 = vadd.f32 %v530, %v809
        %v812 = vadd.f32 %v531, %v810
        %v813 = vstv %s347
        %v814 = vmul.f32 %v813, %v736
        %v815 = vmul.f32 %v813, %v737
        %v816 = vstv %s348
        %v817 = vmul.f32 %v816, %v744
        %v818 = vmul.f32 %v816, %v745
        %v819 = vadd.f32 %v814, %v817
        %v820 = vadd.f32 %v815, %v818
        %v821 = vstv %s349
        %v822 = vmul.f32 %v821, %v752
        %v823 = vmul.f32 %v821, %v753
        %v824 = vadd.f32 %v819, %v822
        %v825 = vadd.f32 %v820, %v823
        %v826 = vstv %s350
        %v827 = vmul.f32 %v826, %v281
        %v828 = vmul.f32 %v826, %v288
        %v829 = vadd.f32 %v824, %v827
        %v830 = vadd.f32 %v825, %v828
        %v831 = vstv %s351
        %v832 = vmul.f32 %v831, %v760
        %v833 = vmul.f32 %v831, %v761
        %v834 = vadd.f32 %v829, %v832
        %v835 = vadd.f32 %v830, %v833
        %v836 = vstv %s352
        %v837 = vmul.f32 %v836, %v768
        %v838 = vmul.f32 %v836, %v769
        %v839 = vadd.f32 %v834, %v837
        %v840 = vadd.f32 %v835, %v838
        %v841 = vstv %s353
        %v842 = vmul.f32 %v841, %v776
        %v843 = vmul.f32 %v841, %v777
        %v844 = vadd.f32 %v839, %v842
        %v845 = vadd.f32 %v840, %v843
        %v846 = vadd.f32 %v563, %v844
        %v847 = vadd.f32 %v564, %v845
        %v848 = vstv %s354
        %v849 = vmul.f32 %v848, %v736
        %v850 = vmul.f32 %v848, %v737
        %v851 = vstv %s355
        %v852 = vmul.f32 %v851, %v744
        %v853 = vmul.f32 %v851, %v745
        %v854 = vadd.f32 %v849, %v852
        %v855 = vadd.f32 %v850, %v853
        %v856 = vstv %s356
        %v857 = vmul.f32 %v856, %v752
        %v858 = vmul.f32 %v856, %v753
        %v859 = vadd.f32 %v854, %v857
        %v860 = vadd.f32 %v855, %v858
        %v861 = vstv %s357
        %v862 = vmul.f32 %v861, %v281
        %v863 = vmul.f32 %v861, %v288
        %v864 = vadd.f32 %v859, %v862
        %v865 = vadd.f32 %v860, %v863
        %v866 = vstv %s358
        %v867 = vmul.f32 %v866, %v760
        %v868 = vmul.f32 %v866, %v761
        %v869 = vadd.f32 %v864, %v867
        %v870 = vadd.f32 %v865, %v868
        %v871 = vstv %s359
        %v872 = vmul.f32 %v871, %v768
        %v873 = vmul.f32 %v871, %v769
        %v874 = vadd.f32 %v869, %v872
        %v875 = vadd.f32 %v870, %v873
        %v876 = vstv %s360
        %v877 = vmul.f32 %v876, %v776
        %v878 = vmul.f32 %v876, %v777
        %v879 = vadd.f32 %v874, %v877
        %v880 = vadd.f32 %v875, %v878
        %v881 = vadd.f32 %v596, %v879
        %v882 = vadd.f32 %v597, %v880
        %v883 = vstv %s361
        %v884 = vmul.f32 %v883, %v736
        %v885 = vmul.f32 %v883, %v737
        %v886 = vstv %s362
        %v887 = vmul.f32 %v886, %v744
        %v888 = vmul.f32 %v886, %v745
        %v889 = vadd.f32 %v884, %v887
        %v890 = vadd.f32 %v885, %v888
        %v891 = vstv %s363
        %v892 = vmul.f32 %v891, %v752
        %v893 = vmul.f32 %v891, %v753
        %v894 = vadd.f32 %v889, %v892
        %v895 = vadd.f32 %v890, %v893
        %v896 = vstv %s364
        %v897 = vmul.f32 %v896, %v281
        %v898 = vmul.f32 %v896, %v288
        %v899 = vadd.f32 %v894, %v897
        %v900 = vadd.f32 %v895, %v898
        %v901 = vstv %s365
        %v902 = vmul.f32 %v901, %v760
        %v903 = vmul.f32 %v901, %v761
        %v904 = vadd.f32 %v899, %v902
        %v905 = vadd.f32 %v900, %v903
        %v906 = vstv %s366
        %v907 = vmul.f32 %v906, %v768
        %v908 = vmul.f32 %v906, %v769
        %v909 = vadd.f32 %v904, %v907
        %v910 = vadd.f32 %v905, %v908
        %v911 = vstv %s367
        %v912 = vmul.f32 %v911, %v776
        %v913 = vmul.f32 %v911, %v777
        %v914 = vadd.f32 %v909, %v912
        %v915 = vadd.f32 %v910, %v913
        %v916 = vadd.f32 %v629, %v914
        %v917 = vadd.f32 %v630, %v915
        %v918 = vstv %s368
        %v919 = vmul.f32 %v918, %v736
        %v920 = vmul.f32 %v918, %v737
        %v921 = vstv %s369
        %v922 = vmul.f32 %v921, %v744
        %v923 = vmul.f32 %v921, %v745
        %v924 = vadd.f32 %v919, %v922
        %v925 = vadd.f32 %v920, %v923
        %v926 = vstv %s370
        %v927 = vmul.f32 %v926, %v752
        %v928 = vmul.f32 %v926, %v753
        %v929 = vadd.f32 %v924, %v927
        %v930 = vadd.f32 %v925, %v928
        %v931 = vstv %s371
        %v932 = vmul.f32 %v931, %v281
        %v933 = vmul.f32 %v931, %v288
        %v934 = vadd.f32 %v929, %v932
        %v935 = vadd.f32 %v930, %v933
        %v936 = vstv %s372
        %v937 = vmul.f32 %v936, %v760
        %v938 = vmul.f32 %v936, %v761
        %v939 = vadd.f32 %v934, %v937
        %v940 = vadd.f32 %v935, %v938
        %v941 = vstv %s373
        %v942 = vmul.f32 %v941, %v768
        %v943 = vmul.f32 %v941, %v769
        %v944 = vadd.f32 %v939, %v942
        %v945 = vadd.f32 %v940, %v943
        %v946 = vstv %s374
        %v947 = vmul.f32 %v946, %v776
        %v948 = vmul.f32 %v946, %v777
        %v949 = vadd.f32 %v944, %v947
        %v950 = vadd.f32 %v945, %v948
        %v951 = vadd.f32 %v662, %v949
        %v952 = vadd.f32 %v663, %v950
        %v953 = vstv %s375
        %v954 = vmul.f32 %v953, %v736
        %v955 = vmul.f32 %v953, %v737
        %v956 = vstv %s376
        %v957 = vmul.f32 %v956, %v744
        %v958 = vmul.f32 %v956, %v745
        %v959 = vadd.f32 %v954, %v957
        %v960 = vadd.f32 %v955, %v958
        %v961 = vstv %s377
        %v962 = vmul.f32 %v961, %v752
        %v963 = vmul.f32 %v961, %v753
        %v964 = vadd.f32 %v959, %v962
        %v965 = vadd.f32 %v960, %v963
        %v966 = vstv %s378
        %v967 = vmul.f32 %v966, %v281
        %v968 = vmul.f32 %v966, %v288
        %v969 = vadd.f32 %v964, %v967
        %v970 = vadd.f32 %v965, %v968
        %v971 = vstv %s379
        %v972 = vmul.f32 %v971, %v760
        %v973 = vmul.f32 %v971, %v761
        %v974 = vadd.f32 %v969, %v972
        %v975 = vadd.f32 %v970, %v973
        %v976 = vstv %s380
        %v977 = vmul.f32 %v976, %v768
        %v978 = vmul.f32 %v976, %v769
        %v979 = vadd.f32 %v974, %v977
        %v980 = vadd.f32 %v975, %v978
        %v981 = vstv %s381
        %v982 = vmul.f32 %v981, %v776
        %v983 = vmul.f32 %v981, %v777
        %v984 = vadd.f32 %v979, %v982
        %v985 = vadd.f32 %v980, %v983
        %v986 = vadd.f32 %v695, %v984
        %v987 = vadd.f32 %v696, %v985
        %v988 = vstv %s382
        %v989 = vmul.f32 %v988, %v736
        %v990 = vmul.f32 %v988, %v737
        %v991 = vstv %s383
        %v992 = vmul.f32 %v991, %v744
        %v993 = vmul.f32 %v991, %v745
        %v994 = vadd.f32 %v989, %v992
        %v995 = vadd.f32 %v990, %v993
        %v996 = vstv %s384
        %v997 = vmul.f32 %v996, %v752
        %v998 = vmul.f32 %v996, %v753
        %v999 = vadd.f32 %v994, %v997
        %v1000 = vadd.f32 %v995, %v998
        %v1001 = vstv %s385
        %v1002 = vmul.f32 %v1001, %v281
        %v1003 = vmul.f32 %v1001, %v288
        %v1004 = vadd.f32 %v999, %v1002
        %v1005 = vadd.f32 %v1000, %v1003
        %v1006 = vstv %s386
        %v1007 = vmul.f32 %v1006, %v760
        %v1008 = vmul.f32 %v1006, %v761
        %v1009 = vadd.f32 %v1004, %v1007
        %v1010 = vadd.f32 %v1005, %v1008
        %v1011 = vstv %s387
        %v1012 = vmul.f32 %v1011, %v768
        %v1013 = vmul.f32 %v1011, %v769
        %v1014 = vadd.f32 %v1009, %v1012
        %v1015 = vadd.f32 %v1010, %v1013
        %v1016 = vstv %s388
        %v1017 = vmul.f32 %v1016, %v776
        %v1018 = vmul.f32 %v1016, %v777
        %v1019 = vadd.f32 %v1014, %v1017
        %v1020 = vadd.f32 %v1015, %v1018
        %v1021 = vadd.f32 %v728, %v1019
        %v1022 = vadd.f32 %v729, %v1020
        %v1023 = vstv %s389
        %1024 = vrot.lane.b32.xlu0 %v811, 48
        %v1025 = vpop.permute.xlu0 %1024
        %1026 = vrot.lane.b32.xlu0 %v812, 48
        %v1027 = vpop.permute.xlu0 %1026
        %vm1028 = vcmp.lt.s32.totalorder %v418, 48
        %v1029 = vsel %vm1028, %v1025, %v1027
        %v1030 = vsel %vm1028, %v1027, %v1025
        %v1032 = vperm.slane %v402, 0
        %v1033 = vperm.slane %v402, 1
        %v1036 = vmul.f32 %v1030, %v1032
        %v1037 = vmul.f32 %v1029, %v1033
        %v1038 = vadd.f32 %v1023, %v1036
        %v1039 = vadd.f32 %v1023, %v1037
        %1040 = vrot.lane.b32.xlu0 %v846, 32
        %v1041 = vpop.permute.xlu0 %1040
        %1042 = vrot.lane.b32.xlu0 %v847, 32
        %v1043 = vpop.permute.xlu0 %1042
        %vm1044 = vcmp.lt.s32.totalorder %v418, 32
        %v1045 = vsel %vm1044, %v1041, %v1043
        %v1046 = vsel %vm1044, %v1043, %v1041
        %v1048 = vperm.slane %v404, 0
        %v1049 = vperm.slane %v404, 1
        %v1052 = vmul.f32 %v1046, %v1048
        %v1053 = vmul.f32 %v1045, %v1049
        %v1054 = vadd.f32 %v1038, %v1052
        %v1055 = vadd.f32 %v1039, %v1053
        %1056 = vrot.lane.b32.xlu0 %v881, 16
        %v1057 = vpop.permute.xlu0 %1056
        %1058 = vrot.lane.b32.xlu0 %v882, 16
        %v1059 = vpop.permute.xlu0 %1058
        %vm1060 = vcmp.lt.s32.totalorder %v418, 16
        %v1061 = vsel %vm1060, %v1057, %v1059
        %v1062 = vsel %vm1060, %v1059, %v1057
        %v1064 = vperm.slane %v406, 0
        %v1065 = vperm.slane %v406, 1
        %v1068 = vmul.f32 %v1062, %v1064
        %v1069 = vmul.f32 %v1061, %v1065
        %v1070 = vadd.f32 %v1054, %v1068
        %v1071 = vadd.f32 %v1055, %v1069
        %v1072 = vadd.f32 %v1070, %v916
        %v1073 = vadd.f32 %v1071, %v917
        %1074 = vrot.lane.b32.xlu0 %v951, 112
        %v1075 = vpop.permute.xlu0 %1074
        %1076 = vrot.lane.b32.xlu0 %v952, 112
        %v1077 = vpop.permute.xlu0 %1076
        %vm1078 = vcmp.lt.s32.totalorder %v418, 112
        %v1079 = vsel %vm1078, %v1075, %v1077
        %v1080 = vsel %vm1078, %v1077, %v1075
        %v1082 = vperm.slane %v408, 0
        %v1083 = vperm.slane %v408, 1
        %v1086 = vmul.f32 %v1079, %v1082
        %v1087 = vmul.f32 %v1080, %v1083
        %v1088 = vadd.f32 %v1072, %v1086
        %v1089 = vadd.f32 %v1073, %v1087
        %1090 = vrot.lane.b32.xlu0 %v986, 96
        %v1091 = vpop.permute.xlu0 %1090
        %1092 = vrot.lane.b32.xlu0 %v987, 96
        %v1093 = vpop.permute.xlu0 %1092
        %vm1094 = vcmp.lt.s32.totalorder %v418, 96
        %v1095 = vsel %vm1094, %v1091, %v1093
        %v1096 = vsel %vm1094, %v1093, %v1091
        %v1098 = vperm.slane %v410, 0
        %v1099 = vperm.slane %v410, 1
        %v1102 = vmul.f32 %v1095, %v1098
        %v1103 = vmul.f32 %v1096, %v1099
        %v1104 = vadd.f32 %v1088, %v1102
        %v1105 = vadd.f32 %v1089, %v1103
        %1106 = vrot.lane.b32.xlu0 %v1021, 80
        %v1107 = vpop.permute.xlu0 %1106
        %1108 = vrot.lane.b32.xlu0 %v1022, 80
        %v1109 = vpop.permute.xlu0 %1108
        %vm1110 = vcmp.lt.s32.totalorder %v418, 80
        %v1111 = vsel %vm1110, %v1107, %v1109
        %v1112 = vsel %vm1110, %v1109, %v1107
        %v1114 = vperm.slane %v412, 0
        %v1115 = vperm.slane %v412, 1
        %v1118 = vmul.f32 %v1111, %v1114
        %v1119 = vmul.f32 %v1112, %v1115
        %v1120 = vadd.f32 %v1104, %v1118
        %v1121 = vadd.f32 %v1105, %v1119
        %v1122 = vxor.u32 %v1120, 2147483648
        %v1123 = vxor.u32 %v1121, 2147483648
        %v1124 = vmul.f32 %v1122, 1.442695
        %v1125 = vpow.pop %v1124
        %v1126 = vmul.f32 %v1123, 1.442695
        %v1127 = vpow.pop %v1126
        %v1128 = vadd.f32 %v1125, 1.0
        %v1129 = vadd.f32 %v1127, 1.0
        %v1130 = vrcp.pop %v1128
        %v1131 = vmul.f32 %v1128, %v1130
        %v1132 = vsub.f32 1.0, %v1131
        %v1133 = vmul.f32 %v1130, %v1132
        %v1134 = vadd.f32 %v1130, %v1133
        %vm1135 = vweird.f32 %v1128
        %vm1136 = vweird.f32 %v1130
        %vm1137 = vmor %vm1135, %vm1136
        %v1138 = vsel %vm1137, %v1130, %v1134
        %v1139 = vand.u32 2147483647, %v1128
        %vm1140 = vcmp.eq.f32.partialorder %v1139, 8.507059e+37
        %v1141 = vand.u32 %v1128, 2147483648
        %v1142 = vor.u32 1.1754944e-38, %v1141
        %v1143 = vsel %vm1140, %v1142, %v1138
        %v1144 = vmul.f32 1.0, %v1143
        %v1145 = vrcp.pop %v1129
        %v1146 = vmul.f32 %v1129, %v1145
        %v1147 = vsub.f32 1.0, %v1146
        %v1148 = vmul.f32 %v1145, %v1147
        %v1149 = vadd.f32 %v1145, %v1148
        %vm1150 = vweird.f32 %v1129
        %vm1151 = vweird.f32 %v1145
        %vm1152 = vmor %vm1150, %vm1151
        %v1153 = vsel %vm1152, %v1145, %v1149
        %v1154 = vand.u32 2147483647, %v1129
        %vm1155 = vcmp.eq.f32.partialorder %v1154, 8.507059e+37
        %v1156 = vand.u32 %v1129, 2147483648
        %v1157 = vor.u32 1.1754944e-38, %v1156
        %v1158 = vsel %vm1155, %v1157, %v1153
        %v1159 = vmul.f32 1.0, %v1158
        %v1160 = vperm.slane %v1144, 0
        %v1161 = vperm.slane %v1159, 0
        %v1164 = vrot.slane %v1161, 4
        %v1165 = vsel %vm255, %v1160, %v1164
        %v1167 = vmul.f32 %v248, %v1165
        %1168 = vst [vmem:[%s247] sm:$0xff] %v1167
        %s1169 = sand.u32 %s121, 1
        %s1170 = scalar_lea.sflag [#allocation7], %s1169
        %s1171 = sand.u32 %s121, 1
        %s1172 = smul.addr %s1171, 8
        %s1173 = scalar_lea.vmem [#allocation12], %s1172
        // Predicated region
        $region49: #{tpu_custom_call.1} parent=35 // pred_check
          %p1174 = pneg %p131
        $region50: #{tpu_custom_call.1} parent=35 // pred_check_branch
          %1176 = sbr.rel (%p1174) target = $region52
        $region51: #{tpu_custom_call.1} parent=35 // pred_region
          %1178 = vsyncadd %s1170, 0
          %s1179 = smul.addr %s24, 2
          %s1180 = smul.addr %s1179, 4
          %s1181 = scalar_lea.hbm %s4, %s1180
          %s1183 = sshll.u32 %s1173, 4
          %s1184 = int_to_ptr.vmem [resolvable:$true] %s1183
          %s1185 = sshll.u32 %s1181, 4
          %s1186 = int_to_ptr.hbm [resolvable:$true] %s1185
          %1188 = dma.vmem_to_hbm [thread:$0]  %s1184, 128, %s1186, %s1170
        $region52: #{tpu_custom_call.1} parent=35 // pred_fallthru
          _
      $region36: #{tpu_custom_call.1} parent=5 // pred_fallthru
        _
      %p1189 = scmp.le.s32.totalorder 2, %s19
      // Predicated region
      $region53: #{tpu_custom_call.1} parent=5 // pred_check
        %p1190 = pneg %p1189
      $region54: #{tpu_custom_call.1} parent=5 // pred_check_branch
        %1192 = sbr.rel (%p1190) target = $region56
      $region55: #{tpu_custom_call.1} parent=5 // pred_region
        %s1193 = ssub.s32 %s19, 2
        // Predicated region
        $region57: #{tpu_custom_call.1} parent=55 // pred_check
          %p1194 = pneg %p137
        $region58: #{tpu_custom_call.1} parent=55 // pred_check_branch
          %1196 = sbr.rel (%p1194) target = $region60
        $region59: #{tpu_custom_call.1} parent=55 // pred_region
          %s1197 = sand.u32 %s122, 1
          %s1198 = scalar_lea.sflag [#allocation7], %s1197
          %s1199 = sand.u32 %s122, 1
          %s1200 = smul.addr %s1199, 8
          %s1201 = scalar_lea.vmem [#allocation12], %s1200
          %1203 = dma.done %s1198, 128
        $region60: #{tpu_custom_call.1} parent=55 // pred_fallthru
          _
      $region56: #{tpu_custom_call.1} parent=5 // pred_fallthru
        _
    $region6: #{tpu_custom_call.1} parent=1 // loop_footer
      %s23 = sadd.s32 1, %s19
    $region7: #{tpu_custom_call.1} parent=1 // loop_footer_branch
      %18 = sbr.rel target = $region3
    $region8: #{tpu_custom_call.1} parent=1 // loop_exit
      _
    %1204 = vsyncpa [#allocation6], 1
    %s1205 = scalar_lea.sflag [#allocation6], 1
    %1206 = vsyncpa %s1205, 1
    %1207 = vsyncpa [#allocation11], 1
    %s1208 = scalar_lea.sflag [#allocation11], 1
    %1209 = vsyncpa %s1208, 1
    %1210 = vsyncpa [#allocation7], 1
    %s1211 = scalar_lea.sflag [#allocation7], 1
    %1212 = vsyncpa %s1211, 1
    %1213 = vsyncpa [#allocation8], 1
    %s1214 = scalar_lea.sflag [#allocation8], 1
    %1215 = vsyncpa %s1214, 1

</llo_original>
